<compile_context>
chip_gen: v7x
topology: tpu7x:2x2x1
jax: 0.10.0
libtpu: 0.0.40
codegen_flags: <defaults>
</compile_context>

<pallas_src>
import functools

import jax
import jax.numpy as jnp
from jax.experimental import pallas as pl
from jax.experimental.pallas import tpu as pltpu

_LANE = 128  # TPU lane width; output is padded to a multiple of this for lane-dense stores.


def _lstm_kernel(x_ref, w_ih_ref, w_hh_ref, b_ref, w_out_ref, b_out_ref,
                 out_ref, gx_ref, *, batch, seq, hidden):
    """Whole LSTM forward in one invocation; recurrence fully unrolled in-kernel."""
    B, S, H = batch, seq, hidden

    # --- Input projection for all timesteps: ONE MXU push, off the serial chain. ---
    # x_ref: (S*B, I), rows are time-major (row = t*B + b).
    gx_ref[...] = (
        jnp.dot(x_ref[...], w_ih_ref[...], preferred_element_type=jnp.float32)
        + b_ref[...]
    )  # (S*B, 4H)

    w_hh = w_hh_ref[...]  # (H, 4H), loaded once, stays in vregs.

    h = jnp.zeros((B, H), jnp.float32)
    c = jnp.zeros((B, H), jnp.float32)
    hs = []

    # --- Recurrence: static fully-unrolled loop; per step only h @ W_hh^T + VPU/EUP work. ---
    for t in range(S):
        # Contiguous, statically-indexed (B, 4H) = (8, 128) tile of the precomputed
        # projection — one aligned vreg load, independent of h, overlaps with the
        # recurrent matmul chain.
        g_x = gx_ref[pl.ds(t * B, B), :]
        pre = g_x + jnp.dot(h, w_hh, preferred_element_type=jnp.float32)  # (B, 4H)

        # One (8, 128) vreg; the three 32-lane static slices are cheap XLU work.
        i_g = jax.nn.sigmoid(pre[:, 0 * H:1 * H])
        f_g = jax.nn.sigmoid(pre[:, 1 * H:2 * H])
        g_g = jnp.tanh(pre[:, 2 * H:3 * H])
        o_g = jax.nn.sigmoid(pre[:, 3 * H:4 * H])

        c = f_g * c + i_g * g_g
        h = o_g * jnp.tanh(c)
        hs.append(h)

    # --- TimeDistributed linear: one matmul over all timesteps, lane-dense store. ---
    hs_tm = jnp.concatenate(hs, axis=0)  # (S*B, H), row = t*B + b (sublane-aligned concat)
    y = (jnp.dot(hs_tm, w_out_ref[...], preferred_element_type=jnp.float32)
         + b_out_ref[...])               # (S*B, OPAD)
    out_ref[...] = y.astype(out_ref.dtype)


@jax.jit
def lstm_forward(x, params):
    """x: (batch, seq, input_size) batch-first, like the PyTorch module.

    params: w_ih (4H, I), w_hh (4H, H), b_ih (4H,), b_hh (4H,), w_out (O, H), b_out (O,).
    Returns (batch, seq, output_size).
    """
    B, S, I = x.shape
    H = params["w_hh"].shape[1]
    O = params["w_out"].shape[0]
    OPAD = _LANE * ((O + _LANE - 1) // _LANE)  # lane-dense padded output width

    f32 = jnp.float32
    w_ih_t = params["w_ih"].T.astype(f32)                                   # (I, 4H)
    w_hh_t = params["w_hh"].T.astype(f32)                                   # (H, 4H)
    b_comb = (params["b_ih"] + params["b_hh"]).reshape(1, 4 * H).astype(f32)
    w_out_p = jnp.zeros((H, OPAD), f32).at[:, :O].set(params["w_out"].T.astype(f32))
    b_out_p = jnp.zeros((1, OPAD), f32).at[:, :O].set(params["b_out"].reshape(1, O).astype(f32))

    # Time-major layout (row = t*B + b): a ~512 B transpose fused with the f32 cast, which
    # makes every per-step read inside the kernel a contiguous aligned (8, 128) tile.
    x_tm = jnp.transpose(x, (1, 0, 2)).reshape(S * B, I).astype(f32)

    kernel = functools.partial(_lstm_kernel, batch=B, seq=S, hidden=H)

    y_flat = pl.pallas_call(
        kernel,
        out_shape=jax.ShapeDtypeStruct((S * B, OPAD), f32),
        grid=(1,),                                  # single invocation; recurrence lives in-kernel
        in_specs=[
            pl.BlockSpec((S * B, I), lambda i: (0, 0)),     # x, time-major rows
            pl.BlockSpec((I, 4 * H), lambda i: (0, 0)),     # W_ih^T (resident)
            pl.BlockSpec((H, 4 * H), lambda i: (0, 0)),     # W_hh^T (resident)
            pl.BlockSpec((1, 4 * H), lambda i: (0, 0)),     # b_ih + b_hh
            pl.BlockSpec((H, OPAD), lambda i: (0, 0)),      # W_out^T, lane-padded
            pl.BlockSpec((1, OPAD), lambda i: (0, 0)),      # b_out, lane-padded
        ],
        out_specs=pl.BlockSpec((S * B, OPAD), lambda i: (0, 0)),
        scratch_shapes=[pltpu.VMEM((S * B, 4 * H), f32)],   # precomputed input projections
        compiler_params=pltpu.CompilerParams(
            dimension_semantics=("arbitrary",),
        ),
    )(x_tm, w_ih_t, w_hh_t, b_comb, w_out_p, b_out_p)

    # Back to the module's batch-first (B, S, O).  The slice drops the lane padding; the
    # transpose acts on 512 B of post-slice data (one tiny fused XLA copy) — writing
    # batch-major directly from the time-major recurrence would require a strided VMEM
    # store / in-register sublane transpose inside the kernel for no measurable gain.
    y = y_flat.reshape(S, B, OPAD)[:, :, :O]
    return jnp.transpose(y, (1, 0, 2))


def lstm_reference(x, params):
    """Pure-JAX reference (lax.scan) matching torch.nn.LSTM + per-step Linear semantics."""
    B, S, I = x.shape
    H = params["w_hh"].shape[1]
    w_ih, w_hh = params["w_ih"], params["w_hh"]
    b = params["b_ih"] + params["b_hh"]

    def step(carry, x_t):
        h, c = carry
        gates = x_t @ w_ih.T + h @ w_hh.T + b
        i_g = jax.nn.sigmoid(gates[:, 0 * H:1 * H])
        f_g = jax.nn.sigmoid(gates[:, 1 * H:2 * H])
        g_g = jnp.tanh(gates[:, 2 * H:3 * H])
        o_g = jax.nn.sigmoid(gates[:, 3 * H:4 * H])
        c_new = f_g * c + i_g * g_g
        h_new = o_g * jnp.tanh(c_new)
        return (h_new, c_new), h_new

    h0 = jnp.zeros((B, H), jnp.float32)
    c0 = jnp.zeros((B, H), jnp.float32)
    _, hs = jax.lax.scan(step, (h0, c0), jnp.transpose(x, (1, 0, 2)))
    out = jnp.einsum("sbh,oh->sbo", hs, params["w_out"]) + params["b_out"]
    return jnp.transpose(out, (1, 0, 2))


if __name__ == "__main__":
    # Module hyperparameters (defaults: batch_size=8, num_future=8, num_layers=1).
    batch_size = 8
    seq_len = 8          # num_future / num_past
    input_size = 2       # trajectory (x, y) features
    hidden_size = 32
    output_size = 2

    key = jax.random.PRNGKey(0)
    ks = jax.random.split(key, 7)
    bound = 1.0 / jnp.sqrt(hidden_size)  # PyTorch-style uniform init scale

    params = {
        "w_ih": jax.random.uniform(ks[0], (4 * hidden_size, input_size),
                                   jnp.float32, -bound, bound),
        "w_hh": jax.random.uniform(ks[1], (4 * hidden_size, hidden_size),
                                   jnp.float32, -bound, bound),
        "b_ih": jax.random.uniform(ks[2], (4 * hidden_size,), jnp.float32, -bound, bound),
        "b_hh": jax.random.uniform(ks[3], (4 * hidden_size,), jnp.float32, -bound, bound),
        "w_out": jax.random.uniform(ks[4], (output_size, hidden_size),
                                    jnp.float32, -bound, bound),
        "b_out": jax.random.uniform(ks[5], (output_size,), jnp.float32, -bound, bound),
    }

    x = jax.random.normal(ks[6], (batch_size, seq_len, input_size), jnp.float32)

    out = lstm_forward(x, params)
    out = jax.block_until_ready(out)

    ref = lstm_reference(x, params)
    assert out.shape == (batch_size, seq_len, output_size), out.shape
    assert jnp.allclose(out, ref, atol=1e-4, rtol=1e-4), "mismatch vs reference"

    print("KERNEL_OK")
</pallas_src>

<mosaic_0001>
module attributes {stable_mosaic.version = 11 : i64} {
  func.func @_lstm_kernel(%arg0: i32, %arg1: memref<64x2xf32, #tpu.memory_space<vmem>>, %arg2: memref<2x128xf32, #tpu.memory_space<vmem>>, %arg3: memref<32x128xf32, #tpu.memory_space<vmem>>, %arg4: memref<1x128xf32, #tpu.memory_space<vmem>>, %arg5: memref<32x128xf32, #tpu.memory_space<vmem>>, %arg6: memref<1x128xf32, #tpu.memory_space<vmem>>, %arg7: memref<64x128xf32, #tpu.memory_space<vmem>>, %arg8: memref<64x128xf32, #tpu.memory_space<vmem>>) attributes {dimension_semantics = [#tpu.dimension_semantics<arbitrary>], iteration_bounds = array<i64: 1>, scalar_prefetch = 0 : i64, scratch_operands = 1 : i64, tpu.core_type = #tpu.core_type<tc>, window_params = [{pipeline_mode = #tpu.pipeline_mode<synchronous>, transform_indices = @transform_0, window_bounds = array<i64: 64, 2>}, {pipeline_mode = #tpu.pipeline_mode<synchronous>, transform_indices = @transform_1, window_bounds = array<i64: 2, 128>}, {pipeline_mode = #tpu.pipeline_mode<synchronous>, transform_indices = @transform_2, window_bounds = array<i64: 32, 128>}, {pipeline_mode = #tpu.pipeline_mode<synchronous>, transform_indices = @transform_3, window_bounds = array<i64: 1, 128>}, {pipeline_mode = #tpu.pipeline_mode<synchronous>, transform_indices = @transform_4, window_bounds = array<i64: 32, 128>}, {pipeline_mode = #tpu.pipeline_mode<synchronous>, transform_indices = @transform_5, window_bounds = array<i64: 1, 128>}, {pipeline_mode = #tpu.pipeline_mode<synchronous>, transform_indices = @transform_6, window_bounds = array<i64: 64, 128>}]} {
    %c0 = arith.constant 0 : index
    %c0_0 = arith.constant 0 : index
    %0 = vector.load %arg1[%c0, %c0_0] : memref<64x2xf32, #tpu.memory_space<vmem>>, vector<64x2xf32>
    %c0_1 = arith.constant 0 : index
    %c0_2 = arith.constant 0 : index
    %1 = vector.load %arg2[%c0_1, %c0_2] : memref<2x128xf32, #tpu.memory_space<vmem>>, vector<2x128xf32>
    %cst = arith.constant dense<0.000000e+00> : vector<64x128xf32>
    %2 = tpu.matmul %0, %1, %cst {dimension_numbers = #tpu.dot_dimension_numbers<[1], [0], [0], [1], [0, 0, 1, 1], [], []>} : vector<64x2xf32>, vector<2x128xf32>, vector<64x128xf32> -> vector<64x128xf32>
    %c0_3 = arith.constant 0 : index
    %c0_4 = arith.constant 0 : index
    %3 = vector.load %arg4[%c0_3, %c0_4] : memref<1x128xf32, #tpu.memory_space<vmem>>, vector<1x128xf32>
    %4 = vector.broadcast %3 : vector<1x128xf32> to vector<64x128xf32>
    %5 = arith.addf %2, %4 : vector<64x128xf32>
    %c0_5 = arith.constant 0 : index
    %c0_6 = arith.constant 0 : index
    %6 = vector.load %arg8[%c0_5, %c0_6] : memref<64x128xf32, #tpu.memory_space<vmem>>, vector<64x128xf32>
    tpu.vector_store %arg8[%c0_5, %c0_6], %5 {strides = array<i32>} : memref<64x128xf32, #tpu.memory_space<vmem>>, vector<64x128xf32>,
    %c0_7 = arith.constant 0 : index
    %c0_8 = arith.constant 0 : index
    %7 = vector.load %arg3[%c0_7, %c0_8] : memref<32x128xf32, #tpu.memory_space<vmem>>, vector<32x128xf32>
    %cst_9 = arith.constant 0.000000e+00 : f32
    %8 = vector.broadcast %cst_9 : f32 to vector<8x32xf32>
    %cst_10 = arith.constant 0.000000e+00 : f32
    %9 = vector.broadcast %cst_10 : f32 to vector<8x32xf32>
    %c0_11 = arith.constant 0 : index
    %c0_12 = arith.constant 0 : index
    %10 = vector.load %arg8[%c0_11, %c0_12] : memref<64x128xf32, #tpu.memory_space<vmem>>, vector<8x128xf32>
    %cst_13 = arith.constant dense<0.000000e+00> : vector<8x128xf32>
    %11 = tpu.matmul %8, %7, %cst_13 {dimension_numbers = #tpu.dot_dimension_numbers<[1], [0], [0], [1], [0, 0, 1, 1], [], []>} : vector<8x32xf32>, vector<32x128xf32>, vector<8x128xf32> -> vector<8x128xf32>
    %12 = arith.addf %10, %11 : vector<8x128xf32>
    %13 = vector.extract_strided_slice %12 {offsets = [0, 0], sizes = [8, 32], strides = [1, 1]} : vector<8x128xf32> to vector<8x32xf32>
    %14 = arith.negf %13 : vector<8x32xf32>
    %15 = math.exp %14 : vector<8x32xf32>
    %cst_14 = arith.constant 1.000000e+00 : f32
    %16 = vector.broadcast %cst_14 : f32 to vector<8x32xf32>
    %17 = arith.addf %16, %15 : vector<8x32xf32>
    %18 = arith.divf %16, %17 : vector<8x32xf32>
    %19 = vector.extract_strided_slice %12 {offsets = [0, 32], sizes = [8, 32], strides = [1, 1]} : vector<8x128xf32> to vector<8x32xf32>
    %20 = arith.negf %19 : vector<8x32xf32>
    %21 = math.exp %20 : vector<8x32xf32>
    %cst_15 = arith.constant 1.000000e+00 : f32
    %22 = vector.broadcast %cst_15 : f32 to vector<8x32xf32>
    %23 = arith.addf %22, %21 : vector<8x32xf32>
    %24 = arith.divf %22, %23 : vector<8x32xf32>
    %25 = vector.extract_strided_slice %12 {offsets = [0, 64], sizes = [8, 32], strides = [1, 1]} : vector<8x128xf32> to vector<8x32xf32>
    %26 = math.tanh %25 : vector<8x32xf32>
    %27 = vector.extract_strided_slice %12 {offsets = [0, 96], sizes = [8, 32], strides = [1, 1]} : vector<8x128xf32> to vector<8x32xf32>
    %28 = arith.negf %27 : vector<8x32xf32>
    %29 = math.exp %28 : vector<8x32xf32>
    %cst_16 = arith.constant 1.000000e+00 : f32
    %30 = vector.broadcast %cst_16 : f32 to vector<8x32xf32>
    %31 = arith.addf %30, %29 : vector<8x32xf32>
    %32 = arith.divf %30, %31 : vector<8x32xf32>
    %33 = arith.mulf %24, %9 : vector<8x32xf32>
    %34 = arith.mulf %18, %26 : vector<8x32xf32>
    %35 = arith.addf %33, %34 : vector<8x32xf32>
    %36 = math.tanh %35 : vector<8x32xf32>
    %37 = arith.mulf %32, %36 : vector<8x32xf32>
    %c8 = arith.constant 8 : index
    %c0_17 = arith.constant 0 : index
    %38 = vector.load %arg8[%c8, %c0_17] : memref<64x128xf32, #tpu.memory_space<vmem>>, vector<8x128xf32>
    %cst_18 = arith.constant dense<0.000000e+00> : vector<8x128xf32>
    %39 = tpu.matmul %37, %7, %cst_18 {dimension_numbers = #tpu.dot_dimension_numbers<[1], [0], [0], [1], [0, 0, 1, 1], [], []>} : vector<8x32xf32>, vector<32x128xf32>, vector<8x128xf32> -> vector<8x128xf32>
    %40 = arith.addf %38, %39 : vector<8x128xf32>
    %41 = vector.extract_strided_slice %40 {offsets = [0, 0], sizes = [8, 32], strides = [1, 1]} : vector<8x128xf32> to vector<8x32xf32>
    %42 = arith.negf %41 : vector<8x32xf32>
    %43 = math.exp %42 : vector<8x32xf32>
    %cst_19 = arith.constant 1.000000e+00 : f32
    %44 = vector.broadcast %cst_19 : f32 to vector<8x32xf32>
    %45 = arith.addf %44, %43 : vector<8x32xf32>
    %46 = arith.divf %44, %45 : vector<8x32xf32>
    %47 = vector.extract_strided_slice %40 {offsets = [0, 32], sizes = [8, 32], strides = [1, 1]} : vector<8x128xf32> to vector<8x32xf32>
    %48 = arith.negf %47 : vector<8x32xf32>
    %49 = math.exp %48 : vector<8x32xf32>
    %cst_20 = arith.constant 1.000000e+00 : f32
    %50 = vector.broadcast %cst_20 : f32 to vector<8x32xf32>
    %51 = arith.addf %50, %49 : vector<8x32xf32>
    %52 = arith.divf %50, %51 : vector<8x32xf32>
    %53 = vector.extract_strided_slice %40 {offsets = [0, 64], sizes = [8, 32], strides = [1, 1]} : vector<8x128xf32> to vector<8x32xf32>
    %54 = math.tanh %53 : vector<8x32xf32>
    %55 = vector.extract_strided_slice %40 {offsets = [0, 96], sizes = [8, 32], strides = [1, 1]} : vector<8x128xf32> to vector<8x32xf32>
    %56 = arith.negf %55 : vector<8x32xf32>
    %57 = math.exp %56 : vector<8x32xf32>
    %cst_21 = arith.constant 1.000000e+00 : f32
    %58 = vector.broadcast %cst_21 : f32 to vector<8x32xf32>
    %59 = arith.addf %58, %57 : vector<8x32xf32>
    %60 = arith.divf %58, %59 : vector<8x32xf32>
    %61 = arith.mulf %52, %35 : vector<8x32xf32>
    %62 = arith.mulf %46, %54 : vector<8x32xf32>
    %63 = arith.addf %61, %62 : vector<8x32xf32>
    %64 = math.tanh %63 : vector<8x32xf32>
    %65 = arith.mulf %60, %64 : vector<8x32xf32>
    %c16 = arith.constant 16 : index
    %c0_22 = arith.constant 0 : index
    %66 = vector.load %arg8[%c16, %c0_22] : memref<64x128xf32, #tpu.memory_space<vmem>>, vector<8x128xf32>
    %cst_23 = arith.constant dense<0.000000e+00> : vector<8x128xf32>
    %67 = tpu.matmul %65, %7, %cst_23 {dimension_numbers = #tpu.dot_dimension_numbers<[1], [0], [0], [1], [0, 0, 1, 1], [], []>} : vector<8x32xf32>, vector<32x128xf32>, vector<8x128xf32> -> vector<8x128xf32>
    %68 = arith.addf %66, %67 : vector<8x128xf32>
    %69 = vector.extract_strided_slice %68 {offsets = [0, 0], sizes = [8, 32], strides = [1, 1]} : vector<8x128xf32> to vector<8x32xf32>
    %70 = arith.negf %69 : vector<8x32xf32>
    %71 = math.exp %70 : vector<8x32xf32>
    %cst_24 = arith.constant 1.000000e+00 : f32
    %72 = vector.broadcast %cst_24 : f32 to vector<8x32xf32>
    %73 = arith.addf %72, %71 : vector<8x32xf32>
    %74 = arith.divf %72, %73 : vector<8x32xf32>
    %75 = vector.extract_strided_slice %68 {offsets = [0, 32], sizes = [8, 32], strides = [1, 1]} : vector<8x128xf32> to vector<8x32xf32>
    %76 = arith.negf %75 : vector<8x32xf32>
    %77 = math.exp %76 : vector<8x32xf32>
    %cst_25 = arith.constant 1.000000e+00 : f32
    %78 = vector.broadcast %cst_25 : f32 to vector<8x32xf32>
    %79 = arith.addf %78, %77 : vector<8x32xf32>
    %80 = arith.divf %78, %79 : vector<8x32xf32>
    %81 = vector.extract_strided_slice %68 {offsets = [0, 64], sizes = [8, 32], strides = [1, 1]} : vector<8x128xf32> to vector<8x32xf32>
    %82 = math.tanh %81 : vector<8x32xf32>
    %83 = vector.extract_strided_slice %68 {offsets = [0, 96], sizes = [8, 32], strides = [1, 1]} : vector<8x128xf32> to vector<8x32xf32>
    %84 = arith.negf %83 : vector<8x32xf32>
    %85 = math.exp %84 : vector<8x32xf32>
    %cst_26 = arith.constant 1.000000e+00 : f32
    %86 = vector.broadcast %cst_26 : f32 to vector<8x32xf32>
    %87 = arith.addf %86, %85 : vector<8x32xf32>
    %88 = arith.divf %86, %87 : vector<8x32xf32>
    %89 = arith.mulf %80, %63 : vector<8x32xf32>
    %90 = arith.mulf %74, %82 : vector<8x32xf32>
    %91 = arith.addf %89, %90 : vector<8x32xf32>
    %92 = math.tanh %91 : vector<8x32xf32>
    %93 = arith.mulf %88, %92 : vector<8x32xf32>
    %c24 = arith.constant 24 : index
    %c0_27 = arith.constant 0 : index
    %94 = vector.load %arg8[%c24, %c0_27] : memref<64x128xf32, #tpu.memory_space<vmem>>, vector<8x128xf32>
    %cst_28 = arith.constant dense<0.000000e+00> : vector<8x128xf32>
    %95 = tpu.matmul %93, %7, %cst_28 {dimension_numbers = #tpu.dot_dimension_numbers<[1], [0], [0], [1], [0, 0, 1, 1], [], []>} : vector<8x32xf32>, vector<32x128xf32>, vector<8x128xf32> -> vector<8x128xf32>
    %96 = arith.addf %94, %95 : vector<8x128xf32>
    %97 = vector.extract_strided_slice %96 {offsets = [0, 0], sizes = [8, 32], strides = [1, 1]} : vector<8x128xf32> to vector<8x32xf32>
    %98 = arith.negf %97 : vector<8x32xf32>
    %99 = math.exp %98 : vector<8x32xf32>
    %cst_29 = arith.constant 1.000000e+00 : f32
    %100 = vector.broadcast %cst_29 : f32 to vector<8x32xf32>
    %101 = arith.addf %100, %99 : vector<8x32xf32>
    %102 = arith.divf %100, %101 : vector<8x32xf32>
    %103 = vector.extract_strided_slice %96 {offsets = [0, 32], sizes = [8, 32], strides = [1, 1]} : vector<8x128xf32> to vector<8x32xf32>
    %104 = arith.negf %103 : vector<8x32xf32>
    %105 = math.exp %104 : vector<8x32xf32>
    %cst_30 = arith.constant 1.000000e+00 : f32
    %106 = vector.broadcast %cst_30 : f32 to vector<8x32xf32>
    %107 = arith.addf %106, %105 : vector<8x32xf32>
    %108 = arith.divf %106, %107 : vector<8x32xf32>
    %109 = vector.extract_strided_slice %96 {offsets = [0, 64], sizes = [8, 32], strides = [1, 1]} : vector<8x128xf32> to vector<8x32xf32>
    %110 = math.tanh %109 : vector<8x32xf32>
    %111 = vector.extract_strided_slice %96 {offsets = [0, 96], sizes = [8, 32], strides = [1, 1]} : vector<8x128xf32> to vector<8x32xf32>
    %112 = arith.negf %111 : vector<8x32xf32>
    %113 = math.exp %112 : vector<8x32xf32>
    %cst_31 = arith.constant 1.000000e+00 : f32
    %114 = vector.broadcast %cst_31 : f32 to vector<8x32xf32>
    %115 = arith.addf %114, %113 : vector<8x32xf32>
    %116 = arith.divf %114, %115 : vector<8x32xf32>
    %117 = arith.mulf %108, %91 : vector<8x32xf32>
    %118 = arith.mulf %102, %110 : vector<8x32xf32>
    %119 = arith.addf %117, %118 : vector<8x32xf32>
    %120 = math.tanh %119 : vector<8x32xf32>
    %121 = arith.mulf %116, %120 : vector<8x32xf32>
    %c32 = arith.constant 32 : index
    %c0_32 = arith.constant 0 : index
    %122 = vector.load %arg8[%c32, %c0_32] : memref<64x128xf32, #tpu.memory_space<vmem>>, vector<8x128xf32>
    %cst_33 = arith.constant dense<0.000000e+00> : vector<8x128xf32>
    %123 = tpu.matmul %121, %7, %cst_33 {dimension_numbers = #tpu.dot_dimension_numbers<[1], [0], [0], [1], [0, 0, 1, 1], [], []>} : vector<8x32xf32>, vector<32x128xf32>, vector<8x128xf32> -> vector<8x128xf32>
    %124 = arith.addf %122, %123 : vector<8x128xf32>
    %125 = vector.extract_strided_slice %124 {offsets = [0, 0], sizes = [8, 32], strides = [1, 1]} : vector<8x128xf32> to vector<8x32xf32>
    %126 = arith.negf %125 : vector<8x32xf32>
    %127 = math.exp %126 : vector<8x32xf32>
    %cst_34 = arith.constant 1.000000e+00 : f32
    %128 = vector.broadcast %cst_34 : f32 to vector<8x32xf32>
    %129 = arith.addf %128, %127 : vector<8x32xf32>
    %130 = arith.divf %128, %129 : vector<8x32xf32>
    %131 = vector.extract_strided_slice %124 {offsets = [0, 32], sizes = [8, 32], strides = [1, 1]} : vector<8x128xf32> to vector<8x32xf32>
    %132 = arith.negf %131 : vector<8x32xf32>
    %133 = math.exp %132 : vector<8x32xf32>
    %cst_35 = arith.constant 1.000000e+00 : f32
    %134 = vector.broadcast %cst_35 : f32 to vector<8x32xf32>
    %135 = arith.addf %134, %133 : vector<8x32xf32>
    %136 = arith.divf %134, %135 : vector<8x32xf32>
    %137 = vector.extract_strided_slice %124 {offsets = [0, 64], sizes = [8, 32], strides = [1, 1]} : vector<8x128xf32> to vector<8x32xf32>
    %138 = math.tanh %137 : vector<8x32xf32>
    %139 = vector.extract_strided_slice %124 {offsets = [0, 96], sizes = [8, 32], strides = [1, 1]} : vector<8x128xf32> to vector<8x32xf32>
    %140 = arith.negf %139 : vector<8x32xf32>
    %141 = math.exp %140 : vector<8x32xf32>
    %cst_36 = arith.constant 1.000000e+00 : f32
    %142 = vector.broadcast %cst_36 : f32 to vector<8x32xf32>
    %143 = arith.addf %142, %141 : vector<8x32xf32>
    %144 = arith.divf %142, %143 : vector<8x32xf32>
    %145 = arith.mulf %136, %119 : vector<8x32xf32>
    %146 = arith.mulf %130, %138 : vector<8x32xf32>
    %147 = arith.addf %145, %146 : vector<8x32xf32>
    %148 = math.tanh %147 : vector<8x32xf32>
    %149 = arith.mulf %144, %148 : vector<8x32xf32>
    %c40 = arith.constant 40 : index
    %c0_37 = arith.constant 0 : index
    %150 = vector.load %arg8[%c40, %c0_37] : memref<64x128xf32, #tpu.memory_space<vmem>>, vector<8x128xf32>
    %cst_38 = arith.constant dense<0.000000e+00> : vector<8x128xf32>
    %151 = tpu.matmul %149, %7, %cst_38 {dimension_numbers = #tpu.dot_dimension_numbers<[1], [0], [0], [1], [0, 0, 1, 1], [], []>} : vector<8x32xf32>, vector<32x128xf32>, vector<8x128xf32> -> vector<8x128xf32>
    %152 = arith.addf %150, %151 : vector<8x128xf32>
    %153 = vector.extract_strided_slice %152 {offsets = [0, 0], sizes = [8, 32], strides = [1, 1]} : vector<8x128xf32> to vector<8x32xf32>
    %154 = arith.negf %153 : vector<8x32xf32>
    %155 = math.exp %154 : vector<8x32xf32>
    %cst_39 = arith.constant 1.000000e+00 : f32
    %156 = vector.broadcast %cst_39 : f32 to vector<8x32xf32>
    %157 = arith.addf %156, %155 : vector<8x32xf32>
    %158 = arith.divf %156, %157 : vector<8x32xf32>
    %159 = vector.extract_strided_slice %152 {offsets = [0, 32], sizes = [8, 32], strides = [1, 1]} : vector<8x128xf32> to vector<8x32xf32>
    %160 = arith.negf %159 : vector<8x32xf32>
    %161 = math.exp %160 : vector<8x32xf32>
    %cst_40 = arith.constant 1.000000e+00 : f32
    %162 = vector.broadcast %cst_40 : f32 to vector<8x32xf32>
    %163 = arith.addf %162, %161 : vector<8x32xf32>
    %164 = arith.divf %162, %163 : vector<8x32xf32>
    %165 = vector.extract_strided_slice %152 {offsets = [0, 64], sizes = [8, 32], strides = [1, 1]} : vector<8x128xf32> to vector<8x32xf32>
    %166 = math.tanh %165 : vector<8x32xf32>
    %167 = vector.extract_strided_slice %152 {offsets = [0, 96], sizes = [8, 32], strides = [1, 1]} : vector<8x128xf32> to vector<8x32xf32>
    %168 = arith.negf %167 : vector<8x32xf32>
    %169 = math.exp %168 : vector<8x32xf32>
    %cst_41 = arith.constant 1.000000e+00 : f32
    %170 = vector.broadcast %cst_41 : f32 to vector<8x32xf32>
    %171 = arith.addf %170, %169 : vector<8x32xf32>
    %172 = arith.divf %170, %171 : vector<8x32xf32>
    %173 = arith.mulf %164, %147 : vector<8x32xf32>
    %174 = arith.mulf %158, %166 : vector<8x32xf32>
    %175 = arith.addf %173, %174 : vector<8x32xf32>
    %176 = math.tanh %175 : vector<8x32xf32>
    %177 = arith.mulf %172, %176 : vector<8x32xf32>
    %c48 = arith.constant 48 : index
    %c0_42 = arith.constant 0 : index
    %178 = vector.load %arg8[%c48, %c0_42] : memref<64x128xf32, #tpu.memory_space<vmem>>, vector<8x128xf32>
    %cst_43 = arith.constant dense<0.000000e+00> : vector<8x128xf32>
    %179 = tpu.matmul %177, %7, %cst_43 {dimension_numbers = #tpu.dot_dimension_numbers<[1], [0], [0], [1], [0, 0, 1, 1], [], []>} : vector<8x32xf32>, vector<32x128xf32>, vector<8x128xf32> -> vector<8x128xf32>
    %180 = arith.addf %178, %179 : vector<8x128xf32>
    %181 = vector.extract_strided_slice %180 {offsets = [0, 0], sizes = [8, 32], strides = [1, 1]} : vector<8x128xf32> to vector<8x32xf32>
    %182 = arith.negf %181 : vector<8x32xf32>
    %183 = math.exp %182 : vector<8x32xf32>
    %cst_44 = arith.constant 1.000000e+00 : f32
    %184 = vector.broadcast %cst_44 : f32 to vector<8x32xf32>
    %185 = arith.addf %184, %183 : vector<8x32xf32>
    %186 = arith.divf %184, %185 : vector<8x32xf32>
    %187 = vector.extract_strided_slice %180 {offsets = [0, 32], sizes = [8, 32], strides = [1, 1]} : vector<8x128xf32> to vector<8x32xf32>
    %188 = arith.negf %187 : vector<8x32xf32>
    %189 = math.exp %188 : vector<8x32xf32>
    %cst_45 = arith.constant 1.000000e+00 : f32
    %190 = vector.broadcast %cst_45 : f32 to vector<8x32xf32>
    %191 = arith.addf %190, %189 : vector<8x32xf32>
    %192 = arith.divf %190, %191 : vector<8x32xf32>
    %193 = vector.extract_strided_slice %180 {offsets = [0, 64], sizes = [8, 32], strides = [1, 1]} : vector<8x128xf32> to vector<8x32xf32>
    %194 = math.tanh %193 : vector<8x32xf32>
    %195 = vector.extract_strided_slice %180 {offsets = [0, 96], sizes = [8, 32], strides = [1, 1]} : vector<8x128xf32> to vector<8x32xf32>
    %196 = arith.negf %195 : vector<8x32xf32>
    %197 = math.exp %196 : vector<8x32xf32>
    %cst_46 = arith.constant 1.000000e+00 : f32
    %198 = vector.broadcast %cst_46 : f32 to vector<8x32xf32>
    %199 = arith.addf %198, %197 : vector<8x32xf32>
    %200 = arith.divf %198, %199 : vector<8x32xf32>
    %201 = arith.mulf %192, %175 : vector<8x32xf32>
    %202 = arith.mulf %186, %194 : vector<8x32xf32>
    %203 = arith.addf %201, %202 : vector<8x32xf32>
    %204 = math.tanh %203 : vector<8x32xf32>
    %205 = arith.mulf %200, %204 : vector<8x32xf32>
    %c56 = arith.constant 56 : index
    %c0_47 = arith.constant 0 : index
    %206 = vector.load %arg8[%c56, %c0_47] : memref<64x128xf32, #tpu.memory_space<vmem>>, vector<8x128xf32>
    %cst_48 = arith.constant dense<0.000000e+00> : vector<8x128xf32>
    %207 = tpu.matmul %205, %7, %cst_48 {dimension_numbers = #tpu.dot_dimension_numbers<[1], [0], [0], [1], [0, 0, 1, 1], [], []>} : vector<8x32xf32>, vector<32x128xf32>, vector<8x128xf32> -> vector<8x128xf32>
    %208 = arith.addf %206, %207 : vector<8x128xf32>
    %209 = vector.extract_strided_slice %208 {offsets = [0, 0], sizes = [8, 32], strides = [1, 1]} : vector<8x128xf32> to vector<8x32xf32>
    %210 = arith.negf %209 : vector<8x32xf32>
    %211 = math.exp %210 : vector<8x32xf32>
    %cst_49 = arith.constant 1.000000e+00 : f32
    %212 = vector.broadcast %cst_49 : f32 to vector<8x32xf32>
    %213 = arith.addf %212, %211 : vector<8x32xf32>
    %214 = arith.divf %212, %213 : vector<8x32xf32>
    %215 = vector.extract_strided_slice %208 {offsets = [0, 32], sizes = [8, 32], strides = [1, 1]} : vector<8x128xf32> to vector<8x32xf32>
    %216 = arith.negf %215 : vector<8x32xf32>
    %217 = math.exp %216 : vector<8x32xf32>
    %cst_50 = arith.constant 1.000000e+00 : f32
    %218 = vector.broadcast %cst_50 : f32 to vector<8x32xf32>
    %219 = arith.addf %218, %217 : vector<8x32xf32>
    %220 = arith.divf %218, %219 : vector<8x32xf32>
    %221 = vector.extract_strided_slice %208 {offsets = [0, 64], sizes = [8, 32], strides = [1, 1]} : vector<8x128xf32> to vector<8x32xf32>
    %222 = math.tanh %221 : vector<8x32xf32>
    %223 = vector.extract_strided_slice %208 {offsets = [0, 96], sizes = [8, 32], strides = [1, 1]} : vector<8x128xf32> to vector<8x32xf32>
    %224 = arith.negf %223 : vector<8x32xf32>
    %225 = math.exp %224 : vector<8x32xf32>
    %cst_51 = arith.constant 1.000000e+00 : f32
    %226 = vector.broadcast %cst_51 : f32 to vector<8x32xf32>
    %227 = arith.addf %226, %225 : vector<8x32xf32>
    %228 = arith.divf %226, %227 : vector<8x32xf32>
    %229 = arith.mulf %220, %203 : vector<8x32xf32>
    %230 = arith.mulf %214, %222 : vector<8x32xf32>
    %231 = arith.addf %229, %230 : vector<8x32xf32>
    %232 = math.tanh %231 : vector<8x32xf32>
    %233 = arith.mulf %228, %232 : vector<8x32xf32>
    %234 = tpu.concatenate %37, %65, %93, %121, %149, %177, %205, %233 in 0 : vector<8x32xf32>, vector<8x32xf32>, vector<8x32xf32>, vector<8x32xf32>, vector<8x32xf32>, vector<8x32xf32>, vector<8x32xf32>, vector<8x32xf32> -> vector<64x32xf32>
    %c0_52 = arith.constant 0 : index
    %c0_53 = arith.constant 0 : index
    %235 = vector.load %arg5[%c0_52, %c0_53] : memref<32x128xf32, #tpu.memory_space<vmem>>, vector<32x128xf32>
    %cst_54 = arith.constant dense<0.000000e+00> : vector<64x128xf32>
    %236 = tpu.matmul %234, %235, %cst_54 {dimension_numbers = #tpu.dot_dimension_numbers<[1], [0], [0], [1], [0, 0, 1, 1], [], []>} : vector<64x32xf32>, vector<32x128xf32>, vector<64x128xf32> -> vector<64x128xf32>
    %c0_55 = arith.constant 0 : index
    %c0_56 = arith.constant 0 : index
    %237 = vector.load %arg6[%c0_55, %c0_56] : memref<1x128xf32, #tpu.memory_space<vmem>>, vector<1x128xf32>
    %238 = vector.broadcast %237 : vector<1x128xf32> to vector<64x128xf32>
    %239 = arith.addf %236, %238 : vector<64x128xf32>
    %c0_57 = arith.constant 0 : index
    %c0_58 = arith.constant 0 : index
    %240 = vector.load %arg7[%c0_57, %c0_58] : memref<64x128xf32, #tpu.memory_space<vmem>>, vector<64x128xf32>
    tpu.vector_store %arg7[%c0_57, %c0_58], %239 {strides = array<i32>} : memref<64x128xf32, #tpu.memory_space<vmem>>, vector<64x128xf32>,
    return
  }
  func.func @transform_0(%arg0: i32) -> (i32, i32) {
    %c0_i32 = arith.constant 0 : i32
    %c0_i32_0 = arith.constant 0 : i32
    %c0_i32_1 = arith.constant 0 : i32
    return %c0_i32, %c0_i32_0 : i32, i32
  }
  func.func @transform_1(%arg0: i32) -> (i32, i32) {
    %c0_i32 = arith.constant 0 : i32
    %c0_i32_0 = arith.constant 0 : i32
    %c0_i32_1 = arith.constant 0 : i32
    return %c0_i32, %c0_i32_0 : i32, i32
  }
  func.func @transform_2(%arg0: i32) -> (i32, i32) {
    %c0_i32 = arith.constant 0 : i32
    %c0_i32_0 = arith.constant 0 : i32
    %c0_i32_1 = arith.constant 0 : i32
    return %c0_i32, %c0_i32_0 : i32, i32
  }
  func.func @transform_3(%arg0: i32) -> (i32, i32) {
    %c0_i32 = arith.constant 0 : i32
    %c0_i32_0 = arith.constant 0 : i32
    %c0_i32_1 = arith.constant 0 : i32
    return %c0_i32, %c0_i32_0 : i32, i32
  }
  func.func @transform_4(%arg0: i32) -> (i32, i32) {
    %c0_i32 = arith.constant 0 : i32
    %c0_i32_0 = arith.constant 0 : i32
    %c0_i32_1 = arith.constant 0 : i32
    return %c0_i32, %c0_i32_0 : i32, i32
  }
  func.func @transform_5(%arg0: i32) -> (i32, i32) {
    %c0_i32 = arith.constant 0 : i32
    %c0_i32_0 = arith.constant 0 : i32
    %c0_i32_1 = arith.constant 0 : i32
    return %c0_i32, %c0_i32_0 : i32, i32
  }
  func.func @transform_6(%arg0: i32) -> (i32, i32) {
    %c0_i32 = arith.constant 0 : i32
    %c0_i32_0 = arith.constant 0 : i32
    %c0_i32_1 = arith.constant 0 : i32
    return %c0_i32, %c0_i32_0 : i32, i32
  }
}

</mosaic_0001>

<llo_original>
// kernel: lstm_forward.1
$region0: #{lstm_forward.1}
  #allocation0 [shape = 'u32[]', space=smem, size = 0x4, offset = 0x4, fixed_abs, tag = 'smem constant byte address 0x4 - core index']
  #allocation1 [shape = 'u32[144,128]{1,0:T(1,128)}', space=vmem, size = 0x12000, scoped, tag = 'internal scratch']
  #allocation2 [shape = 'f32[64,128]{1,0:T(8,128)}', space=vmem, size = 0x8000, scoped, tag = 'scratch operand']
  %s0 = inlined_call_operand.vmem [shape: f32[64,2], index: 0, kind: input, shape index: {}]
  %s1 = inlined_call_operand.vmem [shape: f32[2,128], index: 1, kind: input, shape index: {}]
  %s2 = inlined_call_operand.vmem [shape: f32[32,128], index: 2, kind: input, shape index: {}]
  %s3 = inlined_call_operand.vmem [shape: f32[1,128], index: 3, kind: input, shape index: {}]
  %s4 = inlined_call_operand.vmem [shape: f32[32,128], index: 4, kind: input, shape index: {}]
  %s5 = inlined_call_operand.vmem [shape: f32[1,128], index: 5, kind: input, shape index: {}]
  %s6 = inlined_call_operand.vmem [shape: f32[64,128], index: 6, kind: output, shape index: {}]
  %s7 = sld [smem:[#allocation0]]
  $region34: #{lstm_forward.1} parent=0
    _
  %s9 = ssub.s32 1, %s7
  %s10 = scalar_select 0, %s9, %s7
  // Predicated region
  $region2: #{lstm_forward.1} parent=0 // pred_check
    _
  $region3: #{lstm_forward.1} parent=0 // pred_check_branch
    %12 = sbr.rel (0) target = $region5
  $region4: #{lstm_forward.1} parent=0 // pred_region
    _
  $region5: #{lstm_forward.1} parent=0 // pred_fallthru
    _
  // Predicated region
  $region6: #{lstm_forward.1} parent=0 // pred_check
    _
  $region7: #{lstm_forward.1} parent=0 // pred_check_branch
    %14 = sbr.rel (0) target = $region9
  $region8: #{lstm_forward.1} parent=0 // pred_region
    _
  $region9: #{lstm_forward.1} parent=0 // pred_fallthru
    _
  // Predicated region
  $region10: #{lstm_forward.1} parent=0 // pred_check
    _
  $region11: #{lstm_forward.1} parent=0 // pred_check_branch
    %16 = sbr.rel (0) target = $region13
  $region12: #{lstm_forward.1} parent=0 // pred_region
    _
  $region13: #{lstm_forward.1} parent=0 // pred_fallthru
    _
  // Predicated region
  $region14: #{lstm_forward.1} parent=0 // pred_check
    _
  $region15: #{lstm_forward.1} parent=0 // pred_check_branch
    %18 = sbr.rel (0) target = $region17
  $region16: #{lstm_forward.1} parent=0 // pred_region
    _
  $region17: #{lstm_forward.1} parent=0 // pred_fallthru
    _
  // Predicated region
  $region18: #{lstm_forward.1} parent=0 // pred_check
    _
  $region19: #{lstm_forward.1} parent=0 // pred_check_branch
    %20 = sbr.rel (0) target = $region21
  $region20: #{lstm_forward.1} parent=0 // pred_region
    _
  $region21: #{lstm_forward.1} parent=0 // pred_fallthru
    _
  // Predicated region
  $region22: #{lstm_forward.1} parent=0 // pred_check
    _
  $region23: #{lstm_forward.1} parent=0 // pred_check_branch
    %22 = sbr.rel (0) target = $region25
  $region24: #{lstm_forward.1} parent=0 // pred_region
    _
  $region25: #{lstm_forward.1} parent=0 // pred_fallthru
    _
  %v23 = vld [vmem:[%s0] sm:$0xff]
  %v24 = vld [vmem:[%s0 + $0x8] sm:$0xff]
  %v25 = vld [vmem:[%s0 + $0x10] sm:$0xff]
  %v26 = vld [vmem:[%s0 + $0x18] sm:$0xff]
  %v27 = vld [vmem:[%s0 + $0x20] sm:$0xff]
  %v28 = vld [vmem:[%s0 + $0x28] sm:$0xff]
  %v29 = vld [vmem:[%s0 + $0x30] sm:$0xff]
  %v30 = vld [vmem:[%s0 + $0x38] sm:$0xff]
  %v31 = vld [vmem:[%s1] sm:$0x3]
  %v32 = vld [vmem:[%s3] sm:$0x1]
  %v34 = vlaneseq
  %v35 = vshrl.u32 %v34, 7
  %v36 = vsub.s32 0, %v35
  %v37 = vrot.slane %v32, %v36
  %vm39 = vcmask 15360
  %v41 = vsel %vm39, %v23, 0
  %v44 = vsel %vm39, %v24, 0
  %v47 = vsel %vm39, %v25, 0
  %v50 = vsel %vm39, %v26, 0
  %v53 = vsel %vm39, %v27, 0
  %v56 = vsel %vm39, %v28, 0
  %v59 = vsel %vm39, %v29, 0
  %v62 = vsel %vm39, %v30, 0
  %vm64 = vcmask 1041408
  %v66 = vsel %vm64, %v31, 0
  %68 = vmatprep.subr.mxu0 0.0
  %69 = vmatpush1.msra.mxu0 %v66
  %70 = vmatprep.subr.mxu0 0.0
  %71 = vmatpush1.msra.mxu0 0.0
  %72 = vmatprep.subr.mxu0 0.0
  %73 = vmatpush1.msra.mxu0 0.0
  %74 = vmatprep.subr.mxu0 0.0
  %75 = vmatpush1.msra.mxu0 0.0
  %76 = vmatprep.subr.mxu0 0.0
  %77 = vmatpush1.msra.mxu0 0.0
  %78 = vmatprep.subr.mxu0 0.0
  %79 = vmatpush1.msra.mxu0 0.0
  %80 = vmatprep.subr.mxu0 0.0
  %81 = vmatpush1.msra.mxu0 0.0
  %82 = vmatprep.subr.mxu0 0.0
  %83 = vmatpush1.msra.mxu0 0.0
  %84 = vmatprep.subr.mxu0 0.0
  %85 = vmatpush1.msra.mxu0 0.0
  %86 = vmatprep.subr.mxu0 0.0
  %87 = vmatpush1.msra.mxu0 0.0
  %88 = vmatprep.subr.mxu0 0.0
  %89 = vmatpush1.msra.mxu0 0.0
  %90 = vmatprep.subr.mxu0 0.0
  %91 = vmatpush1.msra.mxu0 0.0
  %92 = vmatprep.subr.mxu0 0.0
  %93 = vmatpush1.msra.mxu0 0.0
  %94 = vmatprep.subr.mxu0 0.0
  %95 = vmatpush1.msra.mxu0 0.0
  %96 = vmatprep.subr.mxu0 0.0
  %97 = vmatpush1.msra.mxu0 0.0
  %98 = vmatprep.subr.mxu0 0.0
  %99 = vmatpush1.msra.mxu0 0.0
  %100 = vmatprep.subr.mxu0 0.0
  %101 = vmatpush1.msra.mxu0 0.0
  %102 = vmatprep.subr.mxu0 0.0
  %103 = vmatpush1.msra.mxu0 0.0
  %104 = vmatprep.subr.mxu0 0.0
  %105 = vmatpush1.msra.mxu0 0.0
  %106 = vmatprep.subr.mxu0 0.0
  %107 = vmatpush1.msra.mxu0 0.0
  %108 = vmatprep.subr.mxu0 0.0
  %109 = vmatpush1.msra.mxu0 0.0
  %110 = vmatprep.subr.mxu0 0.0
  %111 = vmatpush1.msra.mxu0 0.0
  %112 = vmatprep.subr.mxu0 0.0
  %113 = vmatpush1.msra.mxu0 0.0
  %114 = vmatprep.subr.mxu0 0.0
  %115 = vmatpush1.msra.mxu0 0.0
  %116 = vmatprep.subr.mxu0 0.0
  %117 = vmatpush1.msra.mxu0 0.0
  %118 = vmatprep.subr.mxu0 0.0
  %119 = vmatpush1.msra.mxu0 0.0
  %120 = vmatprep.subr.mxu0 0.0
  %121 = vmatpush1.msra.mxu0 0.0
  %122 = vmatprep.subr.mxu0 0.0
  %123 = vmatpush1.msra.mxu0 0.0
  %124 = vmatprep.subr.mxu0 0.0
  %125 = vmatpush1.msra.mxu0 0.0
  %126 = vmatprep.subr.mxu0 0.0
  %127 = vmatpush1.msra.mxu0 0.0
  %128 = vmatprep.subr.mxu0 0.0
  %129 = vmatpush1.msra.mxu0 0.0
  %130 = vmatprep.subr.mxu0 0.0
  %131 = vmatpush1.msra.mxu0 0.0
  %132 = vmatprep.mubr.f32.mxu0 0.0
  %133 = vmatmul.mubr.f32.gmra.mrb[0].mxu0 %v41
  %v134 = vpop.f32.mrb[0].mxu0
  %v135 = vadd.f32 %v37, %v134
  %v136 = vpop.f32.mrb[0].mxu0
  %137 = vmatprep.mubr.f32.mxu0 0.0
  %138 = vmatmul.mubr.f32.gmra.mrb[0].mxu0 %v44
  %v139 = vpop.f32.mrb[0].mxu0
  %v140 = vadd.f32 %v37, %v139
  %v141 = vpop.f32.mrb[0].mxu0
  %142 = vmatprep.mubr.f32.mxu0 0.0
  %143 = vmatmul.mubr.f32.gmra.mrb[0].mxu0 %v47
  %v144 = vpop.f32.mrb[0].mxu0
  %v145 = vadd.f32 %v37, %v144
  %v146 = vpop.f32.mrb[0].mxu0
  %147 = vmatprep.mubr.f32.mxu0 0.0
  %148 = vmatmul.mubr.f32.gmra.mrb[0].mxu0 %v50
  %v149 = vpop.f32.mrb[0].mxu0
  %v150 = vadd.f32 %v37, %v149
  %v151 = vpop.f32.mrb[0].mxu0
  %152 = vmatprep.mubr.f32.mxu0 0.0
  %153 = vmatmul.mubr.f32.gmra.mrb[0].mxu0 %v53
  %v154 = vpop.f32.mrb[0].mxu0
  %v155 = vadd.f32 %v37, %v154
  %v156 = vpop.f32.mrb[0].mxu0
  %157 = vmatprep.mubr.f32.mxu0 0.0
  %158 = vmatmul.mubr.f32.gmra.mrb[0].mxu0 %v56
  %v159 = vpop.f32.mrb[0].mxu0
  %v160 = vadd.f32 %v37, %v159
  %v161 = vpop.f32.mrb[0].mxu0
  %162 = vmatprep.mubr.f32.mxu0 0.0
  %163 = vmatmul.mubr.f32.gmra.mrb[0].mxu0 %v59
  %v164 = vpop.f32.mrb[0].mxu0
  %v165 = vadd.f32 %v37, %v164
  %v166 = vpop.f32.mrb[0].mxu0
  %167 = vmatprep.mubr.f32.mxu0 0.0
  %168 = vmatmul.mubr.f32.gmra.mrb[0].mxu0 %v62
  %v169 = vpop.f32.mrb[0].mxu0
  %v170 = vadd.f32 %v37, %v169
  %v171 = vpop.f32.mrb[0].mxu0
  %172 = vdwg.mxu0
  %173 = vst [vmem:[#allocation2] sm:$0xff] %v135
  %174 = vst [vmem:[#allocation2 + $0x8] sm:$0xff] %v140
  %175 = vst [vmem:[#allocation2 + $0x10] sm:$0xff] %v145
  %176 = vst [vmem:[#allocation2 + $0x18] sm:$0xff] %v150
  %177 = vst [vmem:[#allocation2 + $0x20] sm:$0xff] %v155
  %178 = vst [vmem:[#allocation2 + $0x28] sm:$0xff] %v160
  %179 = vst [vmem:[#allocation2 + $0x30] sm:$0xff] %v165
  %180 = vst [vmem:[#allocation2 + $0x38] sm:$0xff] %v170
  %v181 = vld [vmem:[%s2] sm:$0xff]
  %v182 = vld [vmem:[%s2 + $0x8] sm:$0xff]
  %v183 = vld [vmem:[%s2 + $0x10] sm:$0xff]
  %v184 = vld [vmem:[%s2 + $0x18] sm:$0xff]
  %v185 = vld [vmem:[#allocation2] sm:$0xff]
  %vm186 = vcmask 261120
  %v188 = vsel %vm186, 0.0, 0
  %190 = vmatprep.subr.mxu0 0.0
  %191 = vmatpush1.msra.mxu0 %v181
  %192 = vmatprep.subr.mxu0 0.0
  %193 = vmatpush1.msra.mxu0 %v182
  %194 = vmatprep.subr.mxu0 0.0
  %195 = vmatpush1.msra.mxu0 %v183
  %196 = vmatprep.subr.mxu0 0.0
  %197 = vmatpush1.msra.mxu0 %v184
  %198 = vmatprep.subr.mxu0 0.0
  %199 = vmatpush1.msra.mxu0 0.0
  %200 = vmatprep.subr.mxu0 0.0
  %201 = vmatpush1.msra.mxu0 0.0
  %202 = vmatprep.subr.mxu0 0.0
  %203 = vmatpush1.msra.mxu0 0.0
  %204 = vmatprep.subr.mxu0 0.0
  %205 = vmatpush1.msra.mxu0 0.0
  %206 = vmatprep.subr.mxu0 0.0
  %207 = vmatpush1.msra.mxu0 0.0
  %208 = vmatprep.subr.mxu0 0.0
  %209 = vmatpush1.msra.mxu0 0.0
  %210 = vmatprep.subr.mxu0 0.0
  %211 = vmatpush1.msra.mxu0 0.0
  %212 = vmatprep.subr.mxu0 0.0
  %213 = vmatpush1.msra.mxu0 0.0
  %214 = vmatprep.subr.mxu0 0.0
  %215 = vmatpush1.msra.mxu0 0.0
  %216 = vmatprep.subr.mxu0 0.0
  %217 = vmatpush1.msra.mxu0 0.0
  %218 = vmatprep.subr.mxu0 0.0
  %219 = vmatpush1.msra.mxu0 0.0
  %220 = vmatprep.subr.mxu0 0.0
  %221 = vmatpush1.msra.mxu0 0.0
  %222 = vmatprep.subr.mxu0 0.0
  %223 = vmatpush1.msra.mxu0 0.0
  %224 = vmatprep.subr.mxu0 0.0
  %225 = vmatpush1.msra.mxu0 0.0
  %226 = vmatprep.subr.mxu0 0.0
  %227 = vmatpush1.msra.mxu0 0.0
  %228 = vmatprep.subr.mxu0 0.0
  %229 = vmatpush1.msra.mxu0 0.0
  %230 = vmatprep.subr.mxu0 0.0
  %231 = vmatpush1.msra.mxu0 0.0
  %232 = vmatprep.subr.mxu0 0.0
  %233 = vmatpush1.msra.mxu0 0.0
  %234 = vmatprep.subr.mxu0 0.0
  %235 = vmatpush1.msra.mxu0 0.0
  %236 = vmatprep.subr.mxu0 0.0
  %237 = vmatpush1.msra.mxu0 0.0
  %238 = vmatprep.subr.mxu0 0.0
  %239 = vmatpush1.msra.mxu0 0.0
  %240 = vmatprep.subr.mxu0 0.0
  %241 = vmatpush1.msra.mxu0 0.0
  %242 = vmatprep.subr.mxu0 0.0
  %243 = vmatpush1.msra.mxu0 0.0
  %244 = vmatprep.subr.mxu0 0.0
  %245 = vmatpush1.msra.mxu0 0.0
  %246 = vmatprep.subr.mxu0 0.0
  %247 = vmatpush1.msra.mxu0 0.0
  %248 = vmatprep.subr.mxu0 0.0
  %249 = vmatpush1.msra.mxu0 0.0
  %250 = vmatprep.subr.mxu0 0.0
  %251 = vmatpush1.msra.mxu0 0.0
  %252 = vmatprep.subr.mxu0 0.0
  %253 = vmatpush1.msra.mxu0 0.0
  %254 = vmatprep.mubr.f32.mxu0 0.0
  %255 = vmatmul.mubr.f32.gmra.mrb[0].mxu0 %v188
  %v256 = vpop.f32.mrb[0].mxu0
  %v257 = vadd.f32 0.0, %v256
  %v258 = vpop.f32.mrb[0].mxu0
  %259 = vdwg.mxu0
  %v260 = vadd.f32 %v185, %v257
  %v261 = vxor.u32 %v260, 2147483648
  %v262 = vmul.f32 %v261, 1.442695
  %v263 = vpow.pop %v262
  %v264 = vadd.f32 %v263, 1.0
  %v265 = vrcp.pop %v264
  %v266 = vmul.f32 1.0, %v265
  %v267 = vtanh.pop %v260
  %v268 = vmul.f32 %v266, 0.0
  %270 = vrot.lane.b32.xlu0 %v267, 64
  %v271 = vpop.permute.xlu0 %270
  %v273 = vmul.f32 %v266, %v271
  %275 = vrot.lane.b32.xlu0 %v273, 32
  %v276 = vpop.permute.xlu0 %275
  %v278 = vadd.f32 %v268, %v276
  %v279 = vtanh.pop %v278
  %281 = vrot.lane.b32.xlu0 %v279, 64
  %v282 = vpop.permute.xlu0 %281
  %v284 = vmul.f32 %v266, %v282
  %v285 = vld [vmem:[#allocation2 + $0x8] sm:$0xff]
  %287 = vrot.lane.b32.xlu0 %v284, 32
  %v288 = vpop.permute.xlu0 %287
  %v289 = vsel %vm186, %v288, 0
  %291 = vmatprep.subr.mxu0 0.0
  %292 = vmatpush1.msra.mxu0 %v181
  %293 = vmatprep.subr.mxu0 0.0
  %294 = vmatpush1.msra.mxu0 %v182
  %295 = vmatprep.subr.mxu0 0.0
  %296 = vmatpush1.msra.mxu0 %v183
  %297 = vmatprep.subr.mxu0 0.0
  %298 = vmatpush1.msra.mxu0 %v184
  %299 = vmatprep.subr.mxu0 0.0
  %300 = vmatpush1.msra.mxu0 0.0
  %301 = vmatprep.subr.mxu0 0.0
  %302 = vmatpush1.msra.mxu0 0.0
  %303 = vmatprep.subr.mxu0 0.0
  %304 = vmatpush1.msra.mxu0 0.0
  %305 = vmatprep.subr.mxu0 0.0
  %306 = vmatpush1.msra.mxu0 0.0
  %307 = vmatprep.subr.mxu0 0.0
  %308 = vmatpush1.msra.mxu0 0.0
  %309 = vmatprep.subr.mxu0 0.0
  %310 = vmatpush1.msra.mxu0 0.0
  %311 = vmatprep.subr.mxu0 0.0
  %312 = vmatpush1.msra.mxu0 0.0
  %313 = vmatprep.subr.mxu0 0.0
  %314 = vmatpush1.msra.mxu0 0.0
  %315 = vmatprep.subr.mxu0 0.0
  %316 = vmatpush1.msra.mxu0 0.0
  %317 = vmatprep.subr.mxu0 0.0
  %318 = vmatpush1.msra.mxu0 0.0
  %319 = vmatprep.subr.mxu0 0.0
  %320 = vmatpush1.msra.mxu0 0.0
  %321 = vmatprep.subr.mxu0 0.0
  %322 = vmatpush1.msra.mxu0 0.0
  %323 = vmatprep.subr.mxu0 0.0
  %324 = vmatpush1.msra.mxu0 0.0
  %325 = vmatprep.subr.mxu0 0.0
  %326 = vmatpush1.msra.mxu0 0.0
  %327 = vmatprep.subr.mxu0 0.0
  %328 = vmatpush1.msra.mxu0 0.0
  %329 = vmatprep.subr.mxu0 0.0
  %330 = vmatpush1.msra.mxu0 0.0
  %331 = vmatprep.subr.mxu0 0.0
  %332 = vmatpush1.msra.mxu0 0.0
  %333 = vmatprep.subr.mxu0 0.0
  %334 = vmatpush1.msra.mxu0 0.0
  %335 = vmatprep.subr.mxu0 0.0
  %336 = vmatpush1.msra.mxu0 0.0
  %337 = vmatprep.subr.mxu0 0.0
  %338 = vmatpush1.msra.mxu0 0.0
  %339 = vmatprep.subr.mxu0 0.0
  %340 = vmatpush1.msra.mxu0 0.0
  %341 = vmatprep.subr.mxu0 0.0
  %342 = vmatpush1.msra.mxu0 0.0
  %343 = vmatprep.subr.mxu0 0.0
  %344 = vmatpush1.msra.mxu0 0.0
  %345 = vmatprep.subr.mxu0 0.0
  %346 = vmatpush1.msra.mxu0 0.0
  %347 = vmatprep.subr.mxu0 0.0
  %348 = vmatpush1.msra.mxu0 0.0
  %349 = vmatprep.subr.mxu0 0.0
  %350 = vmatpush1.msra.mxu0 0.0
  %351 = vmatprep.subr.mxu0 0.0
  %352 = vmatpush1.msra.mxu0 0.0
  %353 = vmatprep.subr.mxu0 0.0
  %354 = vmatpush1.msra.mxu0 0.0
  %355 = vmatprep.mubr.f32.mxu0 0.0
  %356 = vmatmul.mubr.f32.gmra.mrb[0].mxu0 %v289
  %v357 = vpop.f32.mrb[0].mxu0
  %v358 = vadd.f32 0.0, %v357
  %v359 = vpop.f32.mrb[0].mxu0
  %360 = vdwg.mxu0
  %v361 = vadd.f32 %v285, %v358
  %v362 = vxor.u32 %v361, 2147483648
  %v363 = vmul.f32 %v362, 1.442695
  %v364 = vpow.pop %v363
  %v365 = vadd.f32 %v364, 1.0
  %v366 = vrcp.pop %v365
  %v367 = vmul.f32 1.0, %v366
  %v368 = vtanh.pop %v361
  %v369 = vmul.f32 %v367, %v278
  %371 = vrot.lane.b32.xlu0 %v368, 64
  %v372 = vpop.permute.xlu0 %371
  %v374 = vmul.f32 %v367, %v372
  %376 = vrot.lane.b32.xlu0 %v374, 32
  %v377 = vpop.permute.xlu0 %376
  %v379 = vadd.f32 %v369, %v377
  %v380 = vtanh.pop %v379
  %382 = vrot.lane.b32.xlu0 %v380, 64
  %v383 = vpop.permute.xlu0 %382
  %v385 = vmul.f32 %v367, %v383
  %v386 = vld [vmem:[#allocation2 + $0x10] sm:$0xff]
  %388 = vrot.lane.b32.xlu0 %v385, 32
  %v389 = vpop.permute.xlu0 %388
  %v390 = vsel %vm186, %v389, 0
  %392 = vmatprep.subr.mxu0 0.0
  %393 = vmatpush1.msra.mxu0 %v181
  %394 = vmatprep.subr.mxu0 0.0
  %395 = vmatpush1.msra.mxu0 %v182
  %396 = vmatprep.subr.mxu0 0.0
  %397 = vmatpush1.msra.mxu0 %v183
  %398 = vmatprep.subr.mxu0 0.0
  %399 = vmatpush1.msra.mxu0 %v184
  %400 = vmatprep.subr.mxu0 0.0
  %401 = vmatpush1.msra.mxu0 0.0
  %402 = vmatprep.subr.mxu0 0.0
  %403 = vmatpush1.msra.mxu0 0.0
  %404 = vmatprep.subr.mxu0 0.0
  %405 = vmatpush1.msra.mxu0 0.0
  %406 = vmatprep.subr.mxu0 0.0
  %407 = vmatpush1.msra.mxu0 0.0
  %408 = vmatprep.subr.mxu0 0.0
  %409 = vmatpush1.msra.mxu0 0.0
  %410 = vmatprep.subr.mxu0 0.0
  %411 = vmatpush1.msra.mxu0 0.0
  %412 = vmatprep.subr.mxu0 0.0
  %413 = vmatpush1.msra.mxu0 0.0
  %414 = vmatprep.subr.mxu0 0.0
  %415 = vmatpush1.msra.mxu0 0.0
  %416 = vmatprep.subr.mxu0 0.0
  %417 = vmatpush1.msra.mxu0 0.0
  %418 = vmatprep.subr.mxu0 0.0
  %419 = vmatpush1.msra.mxu0 0.0
  %420 = vmatprep.subr.mxu0 0.0
  %421 = vmatpush1.msra.mxu0 0.0
  %422 = vmatprep.subr.mxu0 0.0
  %423 = vmatpush1.msra.mxu0 0.0
  %424 = vmatprep.subr.mxu0 0.0
  %425 = vmatpush1.msra.mxu0 0.0
  %426 = vmatprep.subr.mxu0 0.0
  %427 = vmatpush1.msra.mxu0 0.0
  %428 = vmatprep.subr.mxu0 0.0
  %429 = vmatpush1.msra.mxu0 0.0
  %430 = vmatprep.subr.mxu0 0.0
  %431 = vmatpush1.msra.mxu0 0.0
  %432 = vmatprep.subr.mxu0 0.0
  %433 = vmatpush1.msra.mxu0 0.0
  %434 = vmatprep.subr.mxu0 0.0
  %435 = vmatpush1.msra.mxu0 0.0
  %436 = vmatprep.subr.mxu0 0.0
  %437 = vmatpush1.msra.mxu0 0.0
  %438 = vmatprep.subr.mxu0 0.0
  %439 = vmatpush1.msra.mxu0 0.0
  %440 = vmatprep.subr.mxu0 0.0
  %441 = vmatpush1.msra.mxu0 0.0
  %442 = vmatprep.subr.mxu0 0.0
  %443 = vmatpush1.msra.mxu0 0.0
  %444 = vmatprep.subr.mxu0 0.0
  %445 = vmatpush1.msra.mxu0 0.0
  %446 = vmatprep.subr.mxu0 0.0
  %447 = vmatpush1.msra.mxu0 0.0
  %448 = vmatprep.subr.mxu0 0.0
  %449 = vmatpush1.msra.mxu0 0.0
  %450 = vmatprep.subr.mxu0 0.0
  %451 = vmatpush1.msra.mxu0 0.0
  %452 = vmatprep.subr.mxu0 0.0
  %453 = vmatpush1.msra.mxu0 0.0
  %454 = vmatprep.subr.mxu0 0.0
  %455 = vmatpush1.msra.mxu0 0.0
  %456 = vmatprep.mubr.f32.mxu0 0.0
  %457 = vmatmul.mubr.f32.gmra.mrb[0].mxu0 %v390
  %v458 = vpop.f32.mrb[0].mxu0
  %v459 = vadd.f32 0.0, %v458
  %v460 = vpop.f32.mrb[0].mxu0
  %461 = vdwg.mxu0
  %v462 = vadd.f32 %v386, %v459
  %v463 = vxor.u32 %v462, 2147483648
  %v464 = vmul.f32 %v463, 1.442695
  %v465 = vpow.pop %v464
  %v466 = vadd.f32 %v465, 1.0
  %v467 = vrcp.pop %v466
  %v468 = vmul.f32 1.0, %v467
  %v469 = vtanh.pop %v462
  %v470 = vmul.f32 %v468, %v379
  %472 = vrot.lane.b32.xlu0 %v469, 64
  %v473 = vpop.permute.xlu0 %472
  %v475 = vmul.f32 %v468, %v473
  %477 = vrot.lane.b32.xlu0 %v475, 32
  %v478 = vpop.permute.xlu0 %477
  %v480 = vadd.f32 %v470, %v478
  %v481 = vtanh.pop %v480
  %483 = vrot.lane.b32.xlu0 %v481, 64
  %v484 = vpop.permute.xlu0 %483
  %v486 = vmul.f32 %v468, %v484
  %v487 = vld [vmem:[#allocation2 + $0x18] sm:$0xff]
  %489 = vrot.lane.b32.xlu0 %v486, 32
  %v490 = vpop.permute.xlu0 %489
  %v491 = vsel %vm186, %v490, 0
  %493 = vmatprep.subr.mxu0 0.0
  %494 = vmatpush1.msra.mxu0 %v181
  %495 = vmatprep.subr.mxu0 0.0
  %496 = vmatpush1.msra.mxu0 %v182
  %497 = vmatprep.subr.mxu0 0.0
  %498 = vmatpush1.msra.mxu0 %v183
  %499 = vmatprep.subr.mxu0 0.0
  %500 = vmatpush1.msra.mxu0 %v184
  %501 = vmatprep.subr.mxu0 0.0
  %502 = vmatpush1.msra.mxu0 0.0
  %503 = vmatprep.subr.mxu0 0.0
  %504 = vmatpush1.msra.mxu0 0.0
  %505 = vmatprep.subr.mxu0 0.0
  %506 = vmatpush1.msra.mxu0 0.0
  %507 = vmatprep.subr.mxu0 0.0
  %508 = vmatpush1.msra.mxu0 0.0
  %509 = vmatprep.subr.mxu0 0.0
  %510 = vmatpush1.msra.mxu0 0.0
  %511 = vmatprep.subr.mxu0 0.0
  %512 = vmatpush1.msra.mxu0 0.0
  %513 = vmatprep.subr.mxu0 0.0
  %514 = vmatpush1.msra.mxu0 0.0
  %515 = vmatprep.subr.mxu0 0.0
  %516 = vmatpush1.msra.mxu0 0.0
  %517 = vmatprep.subr.mxu0 0.0
  %518 = vmatpush1.msra.mxu0 0.0
  %519 = vmatprep.subr.mxu0 0.0
  %520 = vmatpush1.msra.mxu0 0.0
  %521 = vmatprep.subr.mxu0 0.0
  %522 = vmatpush1.msra.mxu0 0.0
  %523 = vmatprep.subr.mxu0 0.0
  %524 = vmatpush1.msra.mxu0 0.0
  %525 = vmatprep.subr.mxu0 0.0
  %526 = vmatpush1.msra.mxu0 0.0
  %527 = vmatprep.subr.mxu0 0.0
  %528 = vmatpush1.msra.mxu0 0.0
  %529 = vmatprep.subr.mxu0 0.0
  %530 = vmatpush1.msra.mxu0 0.0
  %531 = vmatprep.subr.mxu0 0.0
  %532 = vmatpush1.msra.mxu0 0.0
  %533 = vmatprep.subr.mxu0 0.0
  %534 = vmatpush1.msra.mxu0 0.0
  %535 = vmatprep.subr.mxu0 0.0
  %536 = vmatpush1.msra.mxu0 0.0
  %537 = vmatprep.subr.mxu0 0.0
  %538 = vmatpush1.msra.mxu0 0.0
  %539 = vmatprep.subr.mxu0 0.0
  %540 = vmatpush1.msra.mxu0 0.0
  %541 = vmatprep.subr.mxu0 0.0
  %542 = vmatpush1.msra.mxu0 0.0
  %543 = vmatprep.subr.mxu0 0.0
  %544 = vmatpush1.msra.mxu0 0.0
  %545 = vmatprep.subr.mxu0 0.0
  %546 = vmatpush1.msra.mxu0 0.0
  %547 = vmatprep.subr.mxu0 0.0
  %548 = vmatpush1.msra.mxu0 0.0
  %549 = vmatprep.subr.mxu0 0.0
  %550 = vmatpush1.msra.mxu0 0.0
  %551 = vmatprep.subr.mxu0 0.0
  %552 = vmatpush1.msra.mxu0 0.0
  %553 = vmatprep.subr.mxu0 0.0
  %554 = vmatpush1.msra.mxu0 0.0
  %555 = vmatprep.subr.mxu0 0.0
  %556 = vmatpush1.msra.mxu0 0.0
  %557 = vmatprep.mubr.f32.mxu0 0.0
  %558 = vmatmul.mubr.f32.gmra.mrb[0].mxu0 %v491
  %v559 = vpop.f32.mrb[0].mxu0
  %v560 = vadd.f32 0.0, %v559
  %v561 = vpop.f32.mrb[0].mxu0
  %562 = vdwg.mxu0
  %v563 = vadd.f32 %v487, %v560
  %v564 = vxor.u32 %v563, 2147483648
  %v565 = vmul.f32 %v564, 1.442695
  %v566 = vpow.pop %v565
  %v567 = vadd.f32 %v566, 1.0
  %v568 = vrcp.pop %v567
  %v569 = vmul.f32 1.0, %v568
  %v570 = vtanh.pop %v563
  %v571 = vmul.f32 %v569, %v480
  %573 = vrot.lane.b32.xlu0 %v570, 64
  %v574 = vpop.permute.xlu0 %573
  %v576 = vmul.f32 %v569, %v574
  %578 = vrot.lane.b32.xlu0 %v576, 32
  %v579 = vpop.permute.xlu0 %578
  %v581 = vadd.f32 %v571, %v579
  %v582 = vtanh.pop %v581
  %584 = vrot.lane.b32.xlu0 %v582, 64
  %v585 = vpop.permute.xlu0 %584
  %v587 = vmul.f32 %v569, %v585
  %v588 = vld [vmem:[#allocation2 + $0x20] sm:$0xff]
  %590 = vrot.lane.b32.xlu0 %v587, 32
  %v591 = vpop.permute.xlu0 %590
  %v592 = vsel %vm186, %v591, 0
  %594 = vmatprep.subr.mxu0 0.0
  %595 = vmatpush1.msra.mxu0 %v181
  %596 = vmatprep.subr.mxu0 0.0
  %597 = vmatpush1.msra.mxu0 %v182
  %598 = vmatprep.subr.mxu0 0.0
  %599 = vmatpush1.msra.mxu0 %v183
  %600 = vmatprep.subr.mxu0 0.0
  %601 = vmatpush1.msra.mxu0 %v184
  %602 = vmatprep.subr.mxu0 0.0
  %603 = vmatpush1.msra.mxu0 0.0
  %604 = vmatprep.subr.mxu0 0.0
  %605 = vmatpush1.msra.mxu0 0.0
  %606 = vmatprep.subr.mxu0 0.0
  %607 = vmatpush1.msra.mxu0 0.0
  %608 = vmatprep.subr.mxu0 0.0
  %609 = vmatpush1.msra.mxu0 0.0
  %610 = vmatprep.subr.mxu0 0.0
  %611 = vmatpush1.msra.mxu0 0.0
  %612 = vmatprep.subr.mxu0 0.0
  %613 = vmatpush1.msra.mxu0 0.0
  %614 = vmatprep.subr.mxu0 0.0
  %615 = vmatpush1.msra.mxu0 0.0
  %616 = vmatprep.subr.mxu0 0.0
  %617 = vmatpush1.msra.mxu0 0.0
  %618 = vmatprep.subr.mxu0 0.0
  %619 = vmatpush1.msra.mxu0 0.0
  %620 = vmatprep.subr.mxu0 0.0
  %621 = vmatpush1.msra.mxu0 0.0
  %622 = vmatprep.subr.mxu0 0.0
  %623 = vmatpush1.msra.mxu0 0.0
  %624 = vmatprep.subr.mxu0 0.0
  %625 = vmatpush1.msra.mxu0 0.0
  %626 = vmatprep.subr.mxu0 0.0
  %627 = vmatpush1.msra.mxu0 0.0
  %628 = vmatprep.subr.mxu0 0.0
  %629 = vmatpush1.msra.mxu0 0.0
  %630 = vmatprep.subr.mxu0 0.0
  %631 = vmatpush1.msra.mxu0 0.0
  %632 = vmatprep.subr.mxu0 0.0
  %633 = vmatpush1.msra.mxu0 0.0
  %634 = vmatprep.subr.mxu0 0.0
  %635 = vmatpush1.msra.mxu0 0.0
  %636 = vmatprep.subr.mxu0 0.0
  %637 = vmatpush1.msra.mxu0 0.0
  %638 = vmatprep.subr.mxu0 0.0
  %639 = vmatpush1.msra.mxu0 0.0
  %640 = vmatprep.subr.mxu0 0.0
  %641 = vmatpush1.msra.mxu0 0.0
  %642 = vmatprep.subr.mxu0 0.0
  %643 = vmatpush1.msra.mxu0 0.0
  %644 = vmatprep.subr.mxu0 0.0
  %645 = vmatpush1.msra.mxu0 0.0
  %646 = vmatprep.subr.mxu0 0.0
  %647 = vmatpush1.msra.mxu0 0.0
  %648 = vmatprep.subr.mxu0 0.0
  %649 = vmatpush1.msra.mxu0 0.0
  %650 = vmatprep.subr.mxu0 0.0
  %651 = vmatpush1.msra.mxu0 0.0
  %652 = vmatprep.subr.mxu0 0.0
  %653 = vmatpush1.msra.mxu0 0.0
  %654 = vmatprep.subr.mxu0 0.0
  %655 = vmatpush1.msra.mxu0 0.0
  %656 = vmatprep.subr.mxu0 0.0
  %657 = vmatpush1.msra.mxu0 0.0
  %658 = vmatprep.mubr.f32.mxu0 0.0
  %659 = vmatmul.mubr.f32.gmra.mrb[0].mxu0 %v592
  %v660 = vpop.f32.mrb[0].mxu0
  %v661 = vadd.f32 0.0, %v660
  %v662 = vpop.f32.mrb[0].mxu0
  %663 = vdwg.mxu0
  %v664 = vadd.f32 %v588, %v661
  %v665 = vxor.u32 %v664, 2147483648
  %v666 = vmul.f32 %v665, 1.442695
  %v667 = vpow.pop %v666
  %v668 = vadd.f32 %v667, 1.0
  %v669 = vrcp.pop %v668
  %v670 = vmul.f32 1.0, %v669
  %v671 = vtanh.pop %v664
  %v672 = vmul.f32 %v670, %v581
  %674 = vrot.lane.b32.xlu0 %v671, 64
  %v675 = vpop.permute.xlu0 %674
  %v677 = vmul.f32 %v670, %v675
  %679 = vrot.lane.b32.xlu0 %v677, 32
  %v680 = vpop.permute.xlu0 %679
  %v682 = vadd.f32 %v672, %v680
  %v683 = vtanh.pop %v682
  %685 = vrot.lane.b32.xlu0 %v683, 64
  %v686 = vpop.permute.xlu0 %685
  %v688 = vmul.f32 %v670, %v686
  %v689 = vld [vmem:[#allocation2 + $0x28] sm:$0xff]
  %691 = vrot.lane.b32.xlu0 %v688, 32
  %v692 = vpop.permute.xlu0 %691
  %v693 = vsel %vm186, %v692, 0
  %695 = vmatprep.subr.mxu0 0.0
  %696 = vmatpush1.msra.mxu0 %v181
  %697 = vmatprep.subr.mxu0 0.0
  %698 = vmatpush1.msra.mxu0 %v182
  %699 = vmatprep.subr.mxu0 0.0
  %700 = vmatpush1.msra.mxu0 %v183
  %701 = vmatprep.subr.mxu0 0.0
  %702 = vmatpush1.msra.mxu0 %v184
  %703 = vmatprep.subr.mxu0 0.0
  %704 = vmatpush1.msra.mxu0 0.0
  %705 = vmatprep.subr.mxu0 0.0
  %706 = vmatpush1.msra.mxu0 0.0
  %707 = vmatprep.subr.mxu0 0.0
  %708 = vmatpush1.msra.mxu0 0.0
  %709 = vmatprep.subr.mxu0 0.0
  %710 = vmatpush1.msra.mxu0 0.0
  %711 = vmatprep.subr.mxu0 0.0
  %712 = vmatpush1.msra.mxu0 0.0
  %713 = vmatprep.subr.mxu0 0.0
  %714 = vmatpush1.msra.mxu0 0.0
  %715 = vmatprep.subr.mxu0 0.0
  %716 = vmatpush1.msra.mxu0 0.0
  %717 = vmatprep.subr.mxu0 0.0
  %718 = vmatpush1.msra.mxu0 0.0
  %719 = vmatprep.subr.mxu0 0.0
  %720 = vmatpush1.msra.mxu0 0.0
  %721 = vmatprep.subr.mxu0 0.0
  %722 = vmatpush1.msra.mxu0 0.0
  %723 = vmatprep.subr.mxu0 0.0
  %724 = vmatpush1.msra.mxu0 0.0
  %725 = vmatprep.subr.mxu0 0.0
  %726 = vmatpush1.msra.mxu0 0.0
  %727 = vmatprep.subr.mxu0 0.0
  %728 = vmatpush1.msra.mxu0 0.0
  %729 = vmatprep.subr.mxu0 0.0
  %730 = vmatpush1.msra.mxu0 0.0
  %731 = vmatprep.subr.mxu0 0.0
  %732 = vmatpush1.msra.mxu0 0.0
  %733 = vmatprep.subr.mxu0 0.0
  %734 = vmatpush1.msra.mxu0 0.0
  %735 = vmatprep.subr.mxu0 0.0
  %736 = vmatpush1.msra.mxu0 0.0
  %737 = vmatprep.subr.mxu0 0.0
  %738 = vmatpush1.msra.mxu0 0.0
  %739 = vmatprep.subr.mxu0 0.0
  %740 = vmatpush1.msra.mxu0 0.0
  %741 = vmatprep.subr.mxu0 0.0
  %742 = vmatpush1.msra.mxu0 0.0
  %743 = vmatprep.subr.mxu0 0.0
  %744 = vmatpush1.msra.mxu0 0.0
  %745 = vmatprep.subr.mxu0 0.0
  %746 = vmatpush1.msra.mxu0 0.0
  %747 = vmatprep.subr.mxu0 0.0
  %748 = vmatpush1.msra.mxu0 0.0
  %749 = vmatprep.subr.mxu0 0.0
  %750 = vmatpush1.msra.mxu0 0.0
  %751 = vmatprep.subr.mxu0 0.0
  %752 = vmatpush1.msra.mxu0 0.0
  %753 = vmatprep.subr.mxu0 0.0
  %754 = vmatpush1.msra.mxu0 0.0
  %755 = vmatprep.subr.mxu0 0.0
  %756 = vmatpush1.msra.mxu0 0.0
  %757 = vmatprep.subr.mxu0 0.0
  %758 = vmatpush1.msra.mxu0 0.0
  %759 = vmatprep.mubr.f32.mxu0 0.0
  %760 = vmatmul.mubr.f32.gmra.mrb[0].mxu0 %v693
  %v761 = vpop.f32.mrb[0].mxu0
  %v762 = vadd.f32 0.0, %v761
  %v763 = vpop.f32.mrb[0].mxu0
  %764 = vdwg.mxu0
  %v765 = vadd.f32 %v689, %v762
  %v766 = vxor.u32 %v765, 2147483648
  %v767 = vmul.f32 %v766, 1.442695
  %v768 = vpow.pop %v767
  %v769 = vadd.f32 %v768, 1.0
  %v770 = vrcp.pop %v769
  %v771 = vmul.f32 1.0, %v770
  %v772 = vtanh.pop %v765
  %v773 = vmul.f32 %v771, %v682
  %775 = vrot.lane.b32.xlu0 %v772, 64
  %v776 = vpop.permute.xlu0 %775
  %v778 = vmul.f32 %v771, %v776
  %780 = vrot.lane.b32.xlu0 %v778, 32
  %v781 = vpop.permute.xlu0 %780
  %v783 = vadd.f32 %v773, %v781
  %v784 = vtanh.pop %v783
  %786 = vrot.lane.b32.xlu0 %v784, 64
  %v787 = vpop.permute.xlu0 %786
  %v789 = vmul.f32 %v771, %v787
  %v790 = vld [vmem:[#allocation2 + $0x30] sm:$0xff]
  %792 = vrot.lane.b32.xlu0 %v789, 32
  %v793 = vpop.permute.xlu0 %792
  %v794 = vsel %vm186, %v793, 0
  %796 = vmatprep.subr.mxu0 0.0
  %797 = vmatpush1.msra.mxu0 %v181
  %798 = vmatprep.subr.mxu0 0.0
  %799 = vmatpush1.msra.mxu0 %v182
  %800 = vmatprep.subr.mxu0 0.0
  %801 = vmatpush1.msra.mxu0 %v183
  %802 = vmatprep.subr.mxu0 0.0
  %803 = vmatpush1.msra.mxu0 %v184
  %804 = vmatprep.subr.mxu0 0.0
  %805 = vmatpush1.msra.mxu0 0.0
  %806 = vmatprep.subr.mxu0 0.0
  %807 = vmatpush1.msra.mxu0 0.0
  %808 = vmatprep.subr.mxu0 0.0
  %809 = vmatpush1.msra.mxu0 0.0
  %810 = vmatprep.subr.mxu0 0.0
  %811 = vmatpush1.msra.mxu0 0.0
  %812 = vmatprep.subr.mxu0 0.0
  %813 = vmatpush1.msra.mxu0 0.0
  %814 = vmatprep.subr.mxu0 0.0
  %815 = vmatpush1.msra.mxu0 0.0
  %816 = vmatprep.subr.mxu0 0.0
  %817 = vmatpush1.msra.mxu0 0.0
  %818 = vmatprep.subr.mxu0 0.0
  %819 = vmatpush1.msra.mxu0 0.0
  %820 = vmatprep.subr.mxu0 0.0
  %821 = vmatpush1.msra.mxu0 0.0
  %822 = vmatprep.subr.mxu0 0.0
  %823 = vmatpush1.msra.mxu0 0.0
  %824 = vmatprep.subr.mxu0 0.0
  %825 = vmatpush1.msra.mxu0 0.0
  %826 = vmatprep.subr.mxu0 0.0
  %827 = vmatpush1.msra.mxu0 0.0
  %828 = vmatprep.subr.mxu0 0.0
  %829 = vmatpush1.msra.mxu0 0.0
  %830 = vmatprep.subr.mxu0 0.0
  %831 = vmatpush1.msra.mxu0 0.0
  %832 = vmatprep.subr.mxu0 0.0
  %833 = vmatpush1.msra.mxu0 0.0
  %834 = vmatprep.subr.mxu0 0.0
  %835 = vmatpush1.msra.mxu0 0.0
  %836 = vmatprep.subr.mxu0 0.0
  %837 = vmatpush1.msra.mxu0 0.0
  %838 = vmatprep.subr.mxu0 0.0
  %839 = vmatpush1.msra.mxu0 0.0
  %840 = vmatprep.subr.mxu0 0.0
  %841 = vmatpush1.msra.mxu0 0.0
  %842 = vmatprep.subr.mxu0 0.0
  %843 = vmatpush1.msra.mxu0 0.0
  %844 = vmatprep.subr.mxu0 0.0
  %845 = vmatpush1.msra.mxu0 0.0
  %846 = vmatprep.subr.mxu0 0.0
  %847 = vmatpush1.msra.mxu0 0.0
  %848 = vmatprep.subr.mxu0 0.0
  %849 = vmatpush1.msra.mxu0 0.0
  %850 = vmatprep.subr.mxu0 0.0
  %851 = vmatpush1.msra.mxu0 0.0
  %852 = vmatprep.subr.mxu0 0.0
  %853 = vmatpush1.msra.mxu0 0.0
  %854 = vmatprep.subr.mxu0 0.0
  %855 = vmatpush1.msra.mxu0 0.0
  %856 = vmatprep.subr.mxu0 0.0
  %857 = vmatpush1.msra.mxu0 0.0
  %858 = vmatprep.subr.mxu0 0.0
  %859 = vmatpush1.msra.mxu0 0.0
  %860 = vmatprep.mubr.f32.mxu0 0.0
  %861 = vmatmul.mubr.f32.gmra.mrb[0].mxu0 %v794
  %v862 = vpop.f32.mrb[0].mxu0
  %v863 = vadd.f32 0.0, %v862
  %v864 = vpop.f32.mrb[0].mxu0
  %865 = vdwg.mxu0
  %v866 = vadd.f32 %v790, %v863
  %v867 = vxor.u32 %v866, 2147483648
  %v868 = vmul.f32 %v867, 1.442695
  %v869 = vpow.pop %v868
  %v870 = vadd.f32 %v869, 1.0
  %v871 = vrcp.pop %v870
  %v872 = vmul.f32 1.0, %v871
  %v873 = vtanh.pop %v866
  %v874 = vmul.f32 %v872, %v783
  %876 = vrot.lane.b32.xlu0 %v873, 64
  %v877 = vpop.permute.xlu0 %876
  %v879 = vmul.f32 %v872, %v877
  %881 = vrot.lane.b32.xlu0 %v879, 32
  %v882 = vpop.permute.xlu0 %881
  %v884 = vadd.f32 %v874, %v882
  %v885 = vtanh.pop %v884
  %887 = vrot.lane.b32.xlu0 %v885, 64
  %v888 = vpop.permute.xlu0 %887
  %v890 = vmul.f32 %v872, %v888
  %v891 = vld [vmem:[#allocation2 + $0x38] sm:$0xff]
  %893 = vrot.lane.b32.xlu0 %v890, 32
  %v894 = vpop.permute.xlu0 %893
  %v895 = vsel %vm186, %v894, 0
  %897 = vmatprep.subr.mxu0 0.0
  %898 = vmatpush1.msra.mxu0 %v181
  %899 = vmatprep.subr.mxu0 0.0
  %900 = vmatpush1.msra.mxu0 %v182
  %901 = vmatprep.subr.mxu0 0.0
  %902 = vmatpush1.msra.mxu0 %v183
  %903 = vmatprep.subr.mxu0 0.0
  %904 = vmatpush1.msra.mxu0 %v184
  %905 = vmatprep.subr.mxu0 0.0
  %906 = vmatpush1.msra.mxu0 0.0
  %907 = vmatprep.subr.mxu0 0.0
  %908 = vmatpush1.msra.mxu0 0.0
  %909 = vmatprep.subr.mxu0 0.0
  %910 = vmatpush1.msra.mxu0 0.0
  %911 = vmatprep.subr.mxu0 0.0
  %912 = vmatpush1.msra.mxu0 0.0
  %913 = vmatprep.subr.mxu0 0.0
  %914 = vmatpush1.msra.mxu0 0.0
  %915 = vmatprep.subr.mxu0 0.0
  %916 = vmatpush1.msra.mxu0 0.0
  %917 = vmatprep.subr.mxu0 0.0
  %918 = vmatpush1.msra.mxu0 0.0
  %919 = vmatprep.subr.mxu0 0.0
  %920 = vmatpush1.msra.mxu0 0.0
  %921 = vmatprep.subr.mxu0 0.0
  %922 = vmatpush1.msra.mxu0 0.0
  %923 = vmatprep.subr.mxu0 0.0
  %924 = vmatpush1.msra.mxu0 0.0
  %925 = vmatprep.subr.mxu0 0.0
  %926 = vmatpush1.msra.mxu0 0.0
  %927 = vmatprep.subr.mxu0 0.0
  %928 = vmatpush1.msra.mxu0 0.0
  %929 = vmatprep.subr.mxu0 0.0
  %930 = vmatpush1.msra.mxu0 0.0
  %931 = vmatprep.subr.mxu0 0.0
  %932 = vmatpush1.msra.mxu0 0.0
  %933 = vmatprep.subr.mxu0 0.0
  %934 = vmatpush1.msra.mxu0 0.0
  %935 = vmatprep.subr.mxu0 0.0
  %936 = vmatpush1.msra.mxu0 0.0
  %937 = vmatprep.subr.mxu0 0.0
  %938 = vmatpush1.msra.mxu0 0.0
  %939 = vmatprep.subr.mxu0 0.0
  %940 = vmatpush1.msra.mxu0 0.0
  %941 = vmatprep.subr.mxu0 0.0
  %942 = vmatpush1.msra.mxu0 0.0
  %943 = vmatprep.subr.mxu0 0.0
  %944 = vmatpush1.msra.mxu0 0.0
  %945 = vmatprep.subr.mxu0 0.0
  %946 = vmatpush1.msra.mxu0 0.0
  %947 = vmatprep.subr.mxu0 0.0
  %948 = vmatpush1.msra.mxu0 0.0
  %949 = vmatprep.subr.mxu0 0.0
  %950 = vmatpush1.msra.mxu0 0.0
  %951 = vmatprep.subr.mxu0 0.0
  %952 = vmatpush1.msra.mxu0 0.0
  %953 = vmatprep.subr.mxu0 0.0
  %954 = vmatpush1.msra.mxu0 0.0
  %955 = vmatprep.subr.mxu0 0.0
  %956 = vmatpush1.msra.mxu0 0.0
  %957 = vmatprep.subr.mxu0 0.0
  %958 = vmatpush1.msra.mxu0 0.0
  %959 = vmatprep.subr.mxu0 0.0
  %960 = vmatpush1.msra.mxu0 0.0
  %961 = vmatprep.mubr.f32.mxu0 0.0
  %962 = vmatmul.mubr.f32.gmra.mrb[0].mxu0 %v895
  %v963 = vpop.f32.mrb[0].mxu0
  %v964 = vadd.f32 0.0, %v963
  %v965 = vpop.f32.mrb[0].mxu0
  %966 = vdwg.mxu0
  %v967 = vadd.f32 %v891, %v964
  %v968 = vxor.u32 %v967, 2147483648
  %v969 = vmul.f32 %v968, 1.442695
  %v970 = vpow.pop %v969
  %v971 = vadd.f32 %v970, 1.0
  %v972 = vrcp.pop %v971
  %v973 = vmul.f32 1.0, %v972
  %v974 = vtanh.pop %v967
  %v975 = vmul.f32 %v973, %v884
  %977 = vrot.lane.b32.xlu0 %v974, 64
  %v978 = vpop.permute.xlu0 %977
  %v980 = vmul.f32 %v973, %v978
  %982 = vrot.lane.b32.xlu0 %v980, 32
  %v983 = vpop.permute.xlu0 %982
  %v985 = vadd.f32 %v975, %v983
  %v986 = vtanh.pop %v985
  %988 = vrot.lane.b32.xlu0 %v986, 64
  %v989 = vpop.permute.xlu0 %988
  %v991 = vmul.f32 %v973, %v989
  %v992 = vld [vmem:[%s4] sm:$0xff]
  %v993 = vld [vmem:[%s4 + $0x8] sm:$0xff]
  %v994 = vld [vmem:[%s4 + $0x10] sm:$0xff]
  %v995 = vld [vmem:[%s4 + $0x18] sm:$0xff]
  %v996 = vld [vmem:[%s5] sm:$0x1]
  %v998 = vlaneseq
  %v999 = vshrl.u32 %v998, 7
  %v1000 = vsub.s32 0, %v999
  %v1001 = vrot.slane %v996, %v1000
  %1004 = vrot.lane.b32.xlu0 %v991, 32
  %v1005 = vpop.permute.xlu0 %1004
  %v1006 = vsel %vm186, %v1005, 0
  %1008 = vmatprep.subr.mxu0 0.0
  %1009 = vmatpush1.msra.mxu0 %v992
  %1010 = vmatprep.subr.mxu0 0.0
  %1011 = vmatpush1.msra.mxu0 %v993
  %1012 = vmatprep.subr.mxu0 0.0
  %1013 = vmatpush1.msra.mxu0 %v994
  %1014 = vmatprep.subr.mxu0 0.0
  %1015 = vmatpush1.msra.mxu0 %v995
  %1016 = vmatprep.subr.mxu0 0.0
  %1017 = vmatpush1.msra.mxu0 0.0
  %1018 = vmatprep.subr.mxu0 0.0
  %1019 = vmatpush1.msra.mxu0 0.0
  %1020 = vmatprep.subr.mxu0 0.0
  %1021 = vmatpush1.msra.mxu0 0.0
  %1022 = vmatprep.subr.mxu0 0.0
  %1023 = vmatpush1.msra.mxu0 0.0
  %1024 = vmatprep.subr.mxu0 0.0
  %1025 = vmatpush1.msra.mxu0 0.0
  %1026 = vmatprep.subr.mxu0 0.0
  %1027 = vmatpush1.msra.mxu0 0.0
  %1028 = vmatprep.subr.mxu0 0.0
  %1029 = vmatpush1.msra.mxu0 0.0
  %1030 = vmatprep.subr.mxu0 0.0
  %1031 = vmatpush1.msra.mxu0 0.0
  %1032 = vmatprep.subr.mxu0 0.0
  %1033 = vmatpush1.msra.mxu0 0.0
  %1034 = vmatprep.subr.mxu0 0.0
  %1035 = vmatpush1.msra.mxu0 0.0
  %1036 = vmatprep.subr.mxu0 0.0
  %1037 = vmatpush1.msra.mxu0 0.0
  %1038 = vmatprep.subr.mxu0 0.0
  %1039 = vmatpush1.msra.mxu0 0.0
  %1040 = vmatprep.subr.mxu0 0.0
  %1041 = vmatpush1.msra.mxu0 0.0
  %1042 = vmatprep.subr.mxu0 0.0
  %1043 = vmatpush1.msra.mxu0 0.0
  %1044 = vmatprep.subr.mxu0 0.0
  %1045 = vmatpush1.msra.mxu0 0.0
  %1046 = vmatprep.subr.mxu0 0.0
  %1047 = vmatpush1.msra.mxu0 0.0
  %1048 = vmatprep.subr.mxu0 0.0
  %1049 = vmatpush1.msra.mxu0 0.0
  %1050 = vmatprep.subr.mxu0 0.0
  %1051 = vmatpush1.msra.mxu0 0.0
  %1052 = vmatprep.subr.mxu0 0.0
  %1053 = vmatpush1.msra.mxu0 0.0
  %1054 = vmatprep.subr.mxu0 0.0
  %1055 = vmatpush1.msra.mxu0 0.0
  %1056 = vmatprep.subr.mxu0 0.0
  %1057 = vmatpush1.msra.mxu0 0.0
  %1058 = vmatprep.subr.mxu0 0.0
  %1059 = vmatpush1.msra.mxu0 0.0
  %1060 = vmatprep.subr.mxu0 0.0
  %1061 = vmatpush1.msra.mxu0 0.0
  %1062 = vmatprep.subr.mxu0 0.0
  %1063 = vmatpush1.msra.mxu0 0.0
  %1064 = vmatprep.subr.mxu0 0.0
  %1065 = vmatpush1.msra.mxu0 0.0
  %1066 = vmatprep.subr.mxu0 0.0
  %1067 = vmatpush1.msra.mxu0 0.0
  %1068 = vmatprep.subr.mxu0 0.0
  %1069 = vmatpush1.msra.mxu0 0.0
  %1070 = vmatprep.subr.mxu0 0.0
  %1071 = vmatpush1.msra.mxu0 0.0
  %1072 = vmatprep.mubr.f32.mxu0 0.0
  %1073 = vmatmul.mubr.f32.gmra.mrb[0].mxu0 %v289
  %v1074 = vpop.f32.mrb[0].mxu0
  %v1075 = vadd.f32 %v1001, %v1074
  %v1076 = vpop.f32.mrb[0].mxu0
  %1077 = vmatprep.mubr.f32.mxu0 0.0
  %1078 = vmatmul.mubr.f32.gmra.mrb[0].mxu0 %v390
  %v1079 = vpop.f32.mrb[0].mxu0
  %v1080 = vadd.f32 %v1001, %v1079
  %v1081 = vpop.f32.mrb[0].mxu0
  %1082 = vmatprep.mubr.f32.mxu0 0.0
  %1083 = vmatmul.mubr.f32.gmra.mrb[0].mxu0 %v491
  %v1084 = vpop.f32.mrb[0].mxu0
  %v1085 = vadd.f32 %v1001, %v1084
  %v1086 = vpop.f32.mrb[0].mxu0
  %1087 = vmatprep.mubr.f32.mxu0 0.0
  %1088 = vmatmul.mubr.f32.gmra.mrb[0].mxu0 %v592
  %v1089 = vpop.f32.mrb[0].mxu0
  %v1090 = vadd.f32 %v1001, %v1089
  %v1091 = vpop.f32.mrb[0].mxu0
  %1092 = vmatprep.mubr.f32.mxu0 0.0
  %1093 = vmatmul.mubr.f32.gmra.mrb[0].mxu0 %v693
  %v1094 = vpop.f32.mrb[0].mxu0
  %v1095 = vadd.f32 %v1001, %v1094
  %v1096 = vpop.f32.mrb[0].mxu0
  %1097 = vmatprep.mubr.f32.mxu0 0.0
  %1098 = vmatmul.mubr.f32.gmra.mrb[0].mxu0 %v794
  %v1099 = vpop.f32.mrb[0].mxu0
  %v1100 = vadd.f32 %v1001, %v1099
  %v1101 = vpop.f32.mrb[0].mxu0
  %1102 = vmatprep.mubr.f32.mxu0 0.0
  %1103 = vmatmul.mubr.f32.gmra.mrb[0].mxu0 %v895
  %v1104 = vpop.f32.mrb[0].mxu0
  %v1105 = vadd.f32 %v1001, %v1104
  %v1106 = vpop.f32.mrb[0].mxu0
  %1107 = vmatprep.mubr.f32.mxu0 0.0
  %1108 = vmatmul.mubr.f32.gmra.mrb[0].mxu0 %v1006
  %v1109 = vpop.f32.mrb[0].mxu0
  %v1110 = vadd.f32 %v1001, %v1109
  %v1111 = vpop.f32.mrb[0].mxu0
  %1112 = vdwg.mxu0
  %1113 = vst [vmem:[%s6] sm:$0xff] %v1075
  %1114 = vst [vmem:[%s6 + $0x8] sm:$0xff] %v1080
  %1115 = vst [vmem:[%s6 + $0x10] sm:$0xff] %v1085
  %1116 = vst [vmem:[%s6 + $0x18] sm:$0xff] %v1090
  %1117 = vst [vmem:[%s6 + $0x20] sm:$0xff] %v1095
  %1118 = vst [vmem:[%s6 + $0x28] sm:$0xff] %v1100
  %1119 = vst [vmem:[%s6 + $0x30] sm:$0xff] %v1105
  %1120 = vst [vmem:[%s6 + $0x38] sm:$0xff] %v1110
  // Predicated region
  $region26: #{lstm_forward.1} parent=0 // pred_check
    _
  $region27: #{lstm_forward.1} parent=0 // pred_check_branch
    %1122 = sbr.rel (0) target = $region29
  $region28: #{lstm_forward.1} parent=0 // pred_region
    _
  $region29: #{lstm_forward.1} parent=0 // pred_fallthru
    _
  // Predicated region
  $region30: #{lstm_forward.1} parent=0 // pred_check
    _
  $region31: #{lstm_forward.1} parent=0 // pred_check_branch
    %1124 = sbr.rel (0) target = $region33
  $region32: #{lstm_forward.1} parent=0 // pred_region
    _
  $region33: #{lstm_forward.1} parent=0 // pred_fallthru
    _

</llo_original>
